<compile_context>
chip_gen: v6e
topology: v6e:2x2x1
jax: 0.10.0
libtpu: 0.0.40
codegen_flags: <defaults>
</compile_context>

<pallas_src>
import jax
import jax.numpy as jnp
from jax import lax
from jax.experimental import pallas as pl
from jax.experimental.pallas import tpu as pltpu

FT_DIM = 6 * 5          # 30
FT_OUT_DIM = 32
SEQ = 30                # temporal length after reshape
HID = 32
FPAD = 32               # feature dim padded to 32 so a lane group is 4*32=128
PACK = 4                # batch elements packed per 128-lane group

# conv geometry (derived from the PyTorch module)
K1, S1 = 9, 2
L1 = (SEQ - K1) // S1 + 1        # 11
K2 = 5
L2 = L1 - K2 + 1                 # 7
K3 = 5
L3 = L2 - K3 + 1                 # 3

LANES = PACK * HID               # 128


def _adapt_tconv_kernel(x_ref, w1_ref, w2_ref, wc1_ref, wc2_ref, wc3_ref,
                        wp_ref, bias_ref, o_ref):
    g = x_ref.shape[2]                       # groups of 4 batch elems per tile

    bias = bias_ref[...]                     # (8, 128) f32
    b1, b2 = bias[0:1], bias[1:2]
    cb1, cb2, cb3, pb = bias[2:3], bias[3:4], bias[4:5], bias[5:6]

    # ---- channel_transform: two (30*g, 128)@(128,128) bf16 GEMMs ------------
    x = x_ref[...]                                    # (2, 15, g, 128) bf16
    rows = 2 * (SEQ // 2) * g
    x2 = x.reshape(rows, LANES)                       # layout-preserving merge
    h = jnp.dot(x2, w1_ref[...], preferred_element_type=jnp.float32) + b1
    h = jnp.maximum(h, 0.0).astype(jnp.bfloat16)
    h = jnp.dot(h, w2_ref[...], preferred_element_type=jnp.float32) + b2
    h = jnp.maximum(h, 0.0).astype(jnp.bfloat16)      # (30*g, 128)

    hh = h.reshape(2, SEQ // 2, g, LANES)             # (2, 15, g, 128)
    h_even = hh[0]                                    # time 2m   -> (15, g, 128)
    h_odd = hh[1]                                     # time 2m+1 -> (15, g, 128)

    # ---- Conv1d(32,32,9,stride=2): one im2col GEMM, K = 9*128 ---------------
    # y1[t] needs times 2t+k; k=2m -> h_even[t+m], k=2m+1 -> h_odd[t+m]
    slabs = []
    for k in range(K1):
        m = k // 2
        src = h_even if (k % 2 == 0) else h_odd
        slabs.append(src[m:m + L1])                   # (11, g, 128), lane-aligned
    a1 = jnp.concatenate(slabs, axis=-1)              # (11, g, 1152) bf16
    y = jnp.dot(a1.reshape(L1 * g, K1 * LANES), wc1_ref[...],
                preferred_element_type=jnp.float32) + cb1
    y1 = jnp.maximum(y, 0.0).astype(jnp.bfloat16).reshape(L1, g, LANES)

    # ---- Conv1d(32,32,5): one im2col GEMM, K = 5*128 ------------------------
    a2 = jnp.concatenate([y1[k:k + L2] for k in range(K2)], axis=-1)  # (7,g,640)
    y = jnp.dot(a2.reshape(L2 * g, K2 * LANES), wc2_ref[...],
                preferred_element_type=jnp.float32) + cb2
    y2 = jnp.maximum(y, 0.0).astype(jnp.bfloat16).reshape(L2, g, LANES)

    # ---- Conv1d(32,32,5): one im2col GEMM, K = 5*128 ------------------------
    a3 = jnp.concatenate([y2[k:k + L3] for k in range(K3)], axis=-1)  # (3,g,640)
    y = jnp.dot(a3.reshape(L3 * g, K3 * LANES), wc3_ref[...],
                preferred_element_type=jnp.float32) + cb3
    y3 = jnp.maximum(y, 0.0).astype(jnp.bfloat16).reshape(L3, g, LANES)

    # ---- low_dim_proj: one (g, 384) @ (384, 128) GEMM ------------------------
    yc = jnp.concatenate([y3[t] for t in range(L3)], axis=-1)         # (g, 384)
    out = jnp.dot(yc, wp_ref[...], preferred_element_type=jnp.float32) + pb
    o_ref[...] = out.astype(o_ref.dtype)              # lane-dense (g, 128) slab


def _round_up(n, m):
    return -(-n // m) * m


def _blockdiag4(w):
    """(kin, kout) -> (4*kin, 4*kout) block-diagonal (one block per packed elem)."""
    return jnp.kron(jnp.eye(PACK, dtype=w.dtype), w)


def adapt_tconv_pallas(x, params, batch_tile=512):
    """x: (B, 30*30) float32.  params in torch layouts (see __main__)."""
    (W1, b1, W2, b2, C1, cb1, C2, cb2, C3, cb3, P, pb) = params
    B = x.shape[0]

    # Batch tile must be a multiple of 32 so G = tb/4 is a multiple of 8
    # (sublane rule) -> all in-kernel reshapes/slices are layout-preserving.
    tb_req = max(32, _round_up(batch_tile, 32))
    # keep the grid >= 2 steps when B allows (v7x has 2 TensorCores)
    tb_half = max(32, _round_up(-(-B // 2), 32))
    tb = min(tb_req, tb_half)
    b_pad = _round_up(B, tb)
    g_tile = tb // PACK
    g_total = b_pad // PACK

    # ---- host-side relayout: bf16 first, then pad + time-major + lane-pack ---
    # xt[p, m, g, q*32 + f] = x[4g+q, 2m+p, f]   (f padded 30 -> 32 with zeros)
    xb = x.astype(jnp.bfloat16).reshape(B, SEQ, FT_DIM)
    xb = jnp.pad(xb, ((0, b_pad - B), (0, 0), (0, FPAD - FT_DIM)))
    xb = xb.reshape(b_pad, SEQ // 2, 2, FPAD)
    xt = jnp.transpose(xb, (2, 1, 0, 3))                  # (2, 15, b_pad, 32)
    xt = xt.reshape(2, SEQ // 2, g_total, LANES)          # (2, 15, G, 128)

    # ---- block-diagonal (P=4 lane-packed) weights, bf16 ----------------------
    w1bd = _blockdiag4(jnp.pad(W1.T, ((0, FPAD - FT_DIM), (0, 0))))     # (128,128)
    w2bd = _blockdiag4(W2.T)                                            # (128,128)
    # tap-major slabs; each 128-row slab is block-diag of that tap's (in,out)
    wc1bd = jnp.concatenate([_blockdiag4(C1[:, :, k].T) for k in range(K1)], axis=0)
    wc2bd = jnp.concatenate([_blockdiag4(C2[:, :, k].T) for k in range(K2)], axis=0)
    wc3bd = jnp.concatenate([_blockdiag4(C3[:, :, k].T) for k in range(K3)], axis=0)
    # torch flatten(1) of (B,32,3) orders features as c*3 + t; kernel uses
    # (t-major | q | c) along the contraction axis.
    P3 = P.reshape(FT_OUT_DIM, HID, L3)                                 # [o, c, t]
    wpbd = jnp.concatenate([_blockdiag4(P3[:, :, t].T) for t in range(L3)], axis=0)

    weights = tuple(w.astype(jnp.bfloat16)
                    for w in (w1bd, w2bd, wc1bd, wc2bd, wc3bd, wpbd))

    # all 6 biases packed into one (8,128) f32 array (rows 6,7 are padding)
    bias_rows = jnp.stack([jnp.tile(b.astype(jnp.float32), PACK)
                           for b in (b1, b2, cb1, cb2, cb3, pb)], axis=0)
    bias_pack = jnp.pad(bias_rows, ((0, 2), (0, 0)))

    def w_spec(w):
        # full-array block, constant index -> fetched once, resident across steps
        return pl.BlockSpec(w.shape, lambda i: (0, 0))

    out = pl.pallas_call(
        _adapt_tconv_kernel,
        out_shape=jax.ShapeDtypeStruct((g_total, PACK * FT_OUT_DIM), jnp.float32),
        grid=(b_pad // tb,),
        in_specs=[pl.BlockSpec((2, SEQ // 2, g_tile, LANES), lambda i: (0, 0, i, 0))]
                 + [w_spec(w) for w in weights]
                 + [w_spec(bias_pack)],
        out_specs=pl.BlockSpec((g_tile, PACK * FT_OUT_DIM), lambda i: (i, 0)),
        compiler_params=pltpu.CompilerParams(
            dimension_semantics=("parallel",),
            vmem_limit_bytes=48 * 1024 * 1024),
    )(xt, *weights, bias_pack)

    # un-pack lanes: row g, lanes [q*32:(q+1)*32] -> batch 4g+q
    return out.reshape(b_pad, FT_OUT_DIM)[:B]


def adapt_tconv_reference(x, params):
    """Pure-JAX f32 reference mirroring the PyTorch forward exactly."""
    (W1, b1, W2, b2, C1, cb1, C2, cb2, C3, cb3, P, pb) = params
    B = x.shape[0]
    h = x.reshape(B, SEQ, FT_DIM)
    h = jax.nn.relu(jnp.einsum('blf,of->blo', h, W1) + b1)
    h = jax.nn.relu(jnp.einsum('bli,oi->blo', h, W2) + b2)
    h = jnp.transpose(h, (0, 2, 1))                     # (B, 32, 30) = NCH
    dn = ('NCH', 'OIH', 'NCH')
    y = jax.nn.relu(lax.conv_general_dilated(h, C1, (S1,), 'VALID',
                                             dimension_numbers=dn) + cb1[None, :, None])
    y = jax.nn.relu(lax.conv_general_dilated(y, C2, (1,), 'VALID',
                                             dimension_numbers=dn) + cb2[None, :, None])
    y = jax.nn.relu(lax.conv_general_dilated(y, C3, (1,), 'VALID',
                                             dimension_numbers=dn) + cb3[None, :, None])
    y = y.reshape(B, HID * L3)                          # torch flatten(1), channel-major
    return y @ P.T + pb


if __name__ == "__main__":
    key = jax.random.PRNGKey(0)
    keys = jax.random.split(key, 16)
    B = 2

    def init(k, shape, scale=0.1):
        return scale * jax.random.normal(k, shape, jnp.float32)

    # deterministic synthetic parameters in torch layouts:
    #   Linear.weight: (out,in), Conv1d.weight: (out,in,k)
    params = (
        init(keys[0], (HID, FT_DIM)),           init(keys[1], (HID,)),
        init(keys[2], (HID, HID)),              init(keys[3], (HID,)),
        init(keys[4], (HID, HID, K1)),          init(keys[5], (HID,)),
        init(keys[6], (HID, HID, K2)),          init(keys[7], (HID,)),
        init(keys[8], (HID, HID, K3)),          init(keys[9], (HID,)),
        init(keys[10], (FT_OUT_DIM, HID * L3)), init(keys[11], (FT_OUT_DIM,)),
    )

    x = jax.random.normal(keys[12], (B, SEQ * FT_DIM), jnp.float32)
    # unused inputs of the torch forward signature (kept for interface parity)
    tac = jnp.zeros((B, 4), jnp.float32)
    img = jnp.zeros((B, 3, 8, 8), jnp.float32)
    seg = jnp.zeros((B, 1, 8, 8), jnp.float32)

    def forward(tac, img, seg, x):
        del tac, img, seg   # unused by AdaptTConv.forward
        return adapt_tconv_pallas(x, params)

    out = jax.block_until_ready(jax.jit(forward)(tac, img, seg, x))
    ref = adapt_tconv_reference(x, params)
    assert out.shape == (B, FT_OUT_DIM), out.shape
    # bf16 matmul operands (f32 accumulation) -> looser tolerance than f32 path
    max_err = float(jnp.max(jnp.abs(out - ref)))
    assert jnp.allclose(out, ref, atol=2e-2, rtol=2e-2), f"max err {max_err}"

    # also exercise the multi-tile grid (>=2 steps) + batch-padding path
    B2 = 300
    x2 = jax.random.normal(keys[13], (B2, SEQ * FT_DIM), jnp.float32)
    out2 = jax.block_until_ready(
        jax.jit(lambda xx: adapt_tconv_pallas(xx, params))(x2))
    ref2 = adapt_tconv_reference(x2, params)
    assert out2.shape == (B2, FT_OUT_DIM), out2.shape
    max_err2 = float(jnp.max(jnp.abs(out2 - ref2)))
    assert jnp.allclose(out2, ref2, atol=2e-2, rtol=2e-2), f"max err {max_err2}"

    print("KERNEL_OK")
</pallas_src>

<mosaic_0001>
module attributes {stable_mosaic.version = 11 : i64} {
  func.func @_adapt_tconv_kernel(%arg0: i32, %arg1: memref<2x15x8x128xbf16, #tpu.memory_space<vmem>>, %arg2: memref<128x128xbf16, #tpu.memory_space<vmem>>, %arg3: memref<128x128xbf16, #tpu.memory_space<vmem>>, %arg4: memref<1152x128xbf16, #tpu.memory_space<vmem>>, %arg5: memref<640x128xbf16, #tpu.memory_space<vmem>>, %arg6: memref<640x128xbf16, #tpu.memory_space<vmem>>, %arg7: memref<384x128xbf16, #tpu.memory_space<vmem>>, %arg8: memref<8x128xf32, #tpu.memory_space<vmem>>, %arg9: memref<8x128xf32, #tpu.memory_space<vmem>>) attributes {dimension_semantics = [#tpu.dimension_semantics<parallel>], iteration_bounds = array<i64: 1>, scalar_prefetch = 0 : i64, scratch_operands = 0 : i64, tpu.core_type = #tpu.core_type<tc>, window_params = [{transform_indices = @transform_0, window_bounds = array<i64: 2, 15, 8, 128>}, {pipeline_mode = #tpu.pipeline_mode<synchronous>, transform_indices = @transform_1, window_bounds = array<i64: 128, 128>}, {pipeline_mode = #tpu.pipeline_mode<synchronous>, transform_indices = @transform_2, window_bounds = array<i64: 128, 128>}, {pipeline_mode = #tpu.pipeline_mode<synchronous>, transform_indices = @transform_3, window_bounds = array<i64: 1152, 128>}, {pipeline_mode = #tpu.pipeline_mode<synchronous>, transform_indices = @transform_4, window_bounds = array<i64: 640, 128>}, {pipeline_mode = #tpu.pipeline_mode<synchronous>, transform_indices = @transform_5, window_bounds = array<i64: 640, 128>}, {pipeline_mode = #tpu.pipeline_mode<synchronous>, transform_indices = @transform_6, window_bounds = array<i64: 384, 128>}, {pipeline_mode = #tpu.pipeline_mode<synchronous>, transform_indices = @transform_7, window_bounds = array<i64: 8, 128>}, {transform_indices = @transform_8, window_bounds = array<i64: 8, 128>}]} {
    %c0 = arith.constant 0 : index
    %c0_0 = arith.constant 0 : index
    %0 = vector.load %arg8[%c0, %c0_0] : memref<8x128xf32, #tpu.memory_space<vmem>>, vector<8x128xf32>
    %1 = vector.extract_strided_slice %0 {offsets = [0, 0], sizes = [1, 128], strides = [1, 1]} : vector<8x128xf32> to vector<1x128xf32>
    %2 = vector.extract_strided_slice %0 {offsets = [1, 0], sizes = [1, 128], strides = [1, 1]} : vector<8x128xf32> to vector<1x128xf32>
    %3 = vector.extract_strided_slice %0 {offsets = [2, 0], sizes = [1, 128], strides = [1, 1]} : vector<8x128xf32> to vector<1x128xf32>
    %4 = vector.extract_strided_slice %0 {offsets = [3, 0], sizes = [1, 128], strides = [1, 1]} : vector<8x128xf32> to vector<1x128xf32>
    %5 = vector.extract_strided_slice %0 {offsets = [4, 0], sizes = [1, 128], strides = [1, 1]} : vector<8x128xf32> to vector<1x128xf32>
    %6 = vector.extract_strided_slice %0 {offsets = [5, 0], sizes = [1, 128], strides = [1, 1]} : vector<8x128xf32> to vector<1x128xf32>
    %c0_1 = arith.constant 0 : index
    %c0_2 = arith.constant 0 : index
    %c0_3 = arith.constant 0 : index
    %c0_4 = arith.constant 0 : index
    %7 = vector.load %arg1[%c0_1, %c0_2, %c0_3, %c0_4] : memref<2x15x8x128xbf16, #tpu.memory_space<vmem>>, vector<2x15x8x128xbf16>
    %8 = vector.shape_cast %7 : vector<2x15x8x128xbf16> to vector<240x128xbf16>
    %c0_5 = arith.constant 0 : index
    %c0_6 = arith.constant 0 : index
    %9 = vector.load %arg2[%c0_5, %c0_6] : memref<128x128xbf16, #tpu.memory_space<vmem>>, vector<128x128xbf16>
    %cst = arith.constant dense<0.000000e+00> : vector<240x128xf32>
    %10 = tpu.matmul %8, %9, %cst {dimension_numbers = #tpu.dot_dimension_numbers<[1], [0], [0], [1], [0, 0, 1, 1], [], []>} : vector<240x128xbf16>, vector<128x128xbf16>, vector<240x128xf32> -> vector<240x128xf32>
    %11 = vector.broadcast %1 : vector<1x128xf32> to vector<240x128xf32>
    %12 = arith.addf %10, %11 : vector<240x128xf32>
    %cst_7 = arith.constant 0.000000e+00 : f32
    %13 = vector.broadcast %cst_7 : f32 to vector<240x128xf32>
    %14 = arith.maximumf %12, %13 : vector<240x128xf32>
    %15 = arith.truncf %14 : vector<240x128xf32> to vector<240x128xbf16>
    %c0_8 = arith.constant 0 : index
    %c0_9 = arith.constant 0 : index
    %16 = vector.load %arg3[%c0_8, %c0_9] : memref<128x128xbf16, #tpu.memory_space<vmem>>, vector<128x128xbf16>
    %cst_10 = arith.constant dense<0.000000e+00> : vector<240x128xf32>
    %17 = tpu.matmul %15, %16, %cst_10 {dimension_numbers = #tpu.dot_dimension_numbers<[1], [0], [0], [1], [0, 0, 1, 1], [], []>} : vector<240x128xbf16>, vector<128x128xbf16>, vector<240x128xf32> -> vector<240x128xf32>
    %18 = vector.broadcast %2 : vector<1x128xf32> to vector<240x128xf32>
    %19 = arith.addf %17, %18 : vector<240x128xf32>
    %cst_11 = arith.constant 0.000000e+00 : f32
    %20 = vector.broadcast %cst_11 : f32 to vector<240x128xf32>
    %21 = arith.maximumf %19, %20 : vector<240x128xf32>
    %22 = arith.truncf %21 : vector<240x128xf32> to vector<240x128xbf16>
    %23 = vector.shape_cast %22 : vector<240x128xbf16> to vector<2x15x8x128xbf16>
    %24 = vector.extract_strided_slice %23 {offsets = [0, 0, 0, 0], sizes = [1, 15, 8, 128], strides = [1, 1, 1, 1]} : vector<2x15x8x128xbf16> to vector<1x15x8x128xbf16>
    %25 = vector.shape_cast %24 : vector<1x15x8x128xbf16> to vector<15x8x128xbf16>
    %26 = vector.extract_strided_slice %23 {offsets = [1, 0, 0, 0], sizes = [1, 15, 8, 128], strides = [1, 1, 1, 1]} : vector<2x15x8x128xbf16> to vector<1x15x8x128xbf16>
    %27 = vector.shape_cast %26 : vector<1x15x8x128xbf16> to vector<15x8x128xbf16>
    %28 = vector.extract_strided_slice %25 {offsets = [0, 0, 0], sizes = [11, 8, 128], strides = [1, 1, 1]} : vector<15x8x128xbf16> to vector<11x8x128xbf16>
    %29 = vector.extract_strided_slice %27 {offsets = [0, 0, 0], sizes = [11, 8, 128], strides = [1, 1, 1]} : vector<15x8x128xbf16> to vector<11x8x128xbf16>
    %30 = vector.extract_strided_slice %25 {offsets = [1, 0, 0], sizes = [11, 8, 128], strides = [1, 1, 1]} : vector<15x8x128xbf16> to vector<11x8x128xbf16>
    %31 = vector.extract_strided_slice %27 {offsets = [1, 0, 0], sizes = [11, 8, 128], strides = [1, 1, 1]} : vector<15x8x128xbf16> to vector<11x8x128xbf16>
    %32 = vector.extract_strided_slice %25 {offsets = [2, 0, 0], sizes = [11, 8, 128], strides = [1, 1, 1]} : vector<15x8x128xbf16> to vector<11x8x128xbf16>
    %33 = vector.extract_strided_slice %27 {offsets = [2, 0, 0], sizes = [11, 8, 128], strides = [1, 1, 1]} : vector<15x8x128xbf16> to vector<11x8x128xbf16>
    %34 = vector.extract_strided_slice %25 {offsets = [3, 0, 0], sizes = [11, 8, 128], strides = [1, 1, 1]} : vector<15x8x128xbf16> to vector<11x8x128xbf16>
    %35 = vector.extract_strided_slice %27 {offsets = [3, 0, 0], sizes = [11, 8, 128], strides = [1, 1, 1]} : vector<15x8x128xbf16> to vector<11x8x128xbf16>
    %36 = vector.extract_strided_slice %25 {offsets = [4, 0, 0], sizes = [11, 8, 128], strides = [1, 1, 1]} : vector<15x8x128xbf16> to vector<11x8x128xbf16>
    %37 = tpu.concatenate %28, %29, %30, %31, %32, %33, %34, %35, %36 in 2 : vector<11x8x128xbf16>, vector<11x8x128xbf16>, vector<11x8x128xbf16>, vector<11x8x128xbf16>, vector<11x8x128xbf16>, vector<11x8x128xbf16>, vector<11x8x128xbf16>, vector<11x8x128xbf16>, vector<11x8x128xbf16> -> vector<11x8x1152xbf16>
    %38 = vector.shape_cast %37 : vector<11x8x1152xbf16> to vector<88x1152xbf16>
    %c0_12 = arith.constant 0 : index
    %c0_13 = arith.constant 0 : index
    %39 = vector.load %arg4[%c0_12, %c0_13] : memref<1152x128xbf16, #tpu.memory_space<vmem>>, vector<1152x128xbf16>
    %cst_14 = arith.constant dense<0.000000e+00> : vector<88x128xf32>
    %40 = tpu.matmul %38, %39, %cst_14 {dimension_numbers = #tpu.dot_dimension_numbers<[1], [0], [0], [1], [0, 0, 1, 1], [], []>} : vector<88x1152xbf16>, vector<1152x128xbf16>, vector<88x128xf32> -> vector<88x128xf32>
    %41 = vector.broadcast %3 : vector<1x128xf32> to vector<88x128xf32>
    %42 = arith.addf %40, %41 : vector<88x128xf32>
    %cst_15 = arith.constant 0.000000e+00 : f32
    %43 = vector.broadcast %cst_15 : f32 to vector<88x128xf32>
    %44 = arith.maximumf %42, %43 : vector<88x128xf32>
    %45 = arith.truncf %44 : vector<88x128xf32> to vector<88x128xbf16>
    %46 = vector.shape_cast %45 : vector<88x128xbf16> to vector<11x8x128xbf16>
    %47 = vector.extract_strided_slice %46 {offsets = [0, 0, 0], sizes = [7, 8, 128], strides = [1, 1, 1]} : vector<11x8x128xbf16> to vector<7x8x128xbf16>
    %48 = vector.extract_strided_slice %46 {offsets = [1, 0, 0], sizes = [7, 8, 128], strides = [1, 1, 1]} : vector<11x8x128xbf16> to vector<7x8x128xbf16>
    %49 = vector.extract_strided_slice %46 {offsets = [2, 0, 0], sizes = [7, 8, 128], strides = [1, 1, 1]} : vector<11x8x128xbf16> to vector<7x8x128xbf16>
    %50 = vector.extract_strided_slice %46 {offsets = [3, 0, 0], sizes = [7, 8, 128], strides = [1, 1, 1]} : vector<11x8x128xbf16> to vector<7x8x128xbf16>
    %51 = vector.extract_strided_slice %46 {offsets = [4, 0, 0], sizes = [7, 8, 128], strides = [1, 1, 1]} : vector<11x8x128xbf16> to vector<7x8x128xbf16>
    %52 = tpu.concatenate %47, %48, %49, %50, %51 in 2 : vector<7x8x128xbf16>, vector<7x8x128xbf16>, vector<7x8x128xbf16>, vector<7x8x128xbf16>, vector<7x8x128xbf16> -> vector<7x8x640xbf16>
    %53 = vector.shape_cast %52 : vector<7x8x640xbf16> to vector<56x640xbf16>
    %c0_16 = arith.constant 0 : index
    %c0_17 = arith.constant 0 : index
    %54 = vector.load %arg5[%c0_16, %c0_17] : memref<640x128xbf16, #tpu.memory_space<vmem>>, vector<640x128xbf16>
    %cst_18 = arith.constant dense<0.000000e+00> : vector<56x128xf32>
    %55 = tpu.matmul %53, %54, %cst_18 {dimension_numbers = #tpu.dot_dimension_numbers<[1], [0], [0], [1], [0, 0, 1, 1], [], []>} : vector<56x640xbf16>, vector<640x128xbf16>, vector<56x128xf32> -> vector<56x128xf32>
    %56 = vector.broadcast %4 : vector<1x128xf32> to vector<56x128xf32>
    %57 = arith.addf %55, %56 : vector<56x128xf32>
    %cst_19 = arith.constant 0.000000e+00 : f32
    %58 = vector.broadcast %cst_19 : f32 to vector<56x128xf32>
    %59 = arith.maximumf %57, %58 : vector<56x128xf32>
    %60 = arith.truncf %59 : vector<56x128xf32> to vector<56x128xbf16>
    %61 = vector.shape_cast %60 : vector<56x128xbf16> to vector<7x8x128xbf16>
    %62 = vector.extract_strided_slice %61 {offsets = [0, 0, 0], sizes = [3, 8, 128], strides = [1, 1, 1]} : vector<7x8x128xbf16> to vector<3x8x128xbf16>
    %63 = vector.extract_strided_slice %61 {offsets = [1, 0, 0], sizes = [3, 8, 128], strides = [1, 1, 1]} : vector<7x8x128xbf16> to vector<3x8x128xbf16>
    %64 = vector.extract_strided_slice %61 {offsets = [2, 0, 0], sizes = [3, 8, 128], strides = [1, 1, 1]} : vector<7x8x128xbf16> to vector<3x8x128xbf16>
    %65 = vector.extract_strided_slice %61 {offsets = [3, 0, 0], sizes = [3, 8, 128], strides = [1, 1, 1]} : vector<7x8x128xbf16> to vector<3x8x128xbf16>
    %66 = vector.extract_strided_slice %61 {offsets = [4, 0, 0], sizes = [3, 8, 128], strides = [1, 1, 1]} : vector<7x8x128xbf16> to vector<3x8x128xbf16>
    %67 = tpu.concatenate %62, %63, %64, %65, %66 in 2 : vector<3x8x128xbf16>, vector<3x8x128xbf16>, vector<3x8x128xbf16>, vector<3x8x128xbf16>, vector<3x8x128xbf16> -> vector<3x8x640xbf16>
    %68 = vector.shape_cast %67 : vector<3x8x640xbf16> to vector<24x640xbf16>
    %c0_20 = arith.constant 0 : index
    %c0_21 = arith.constant 0 : index
    %69 = vector.load %arg6[%c0_20, %c0_21] : memref<640x128xbf16, #tpu.memory_space<vmem>>, vector<640x128xbf16>
    %cst_22 = arith.constant dense<0.000000e+00> : vector<24x128xf32>
    %70 = tpu.matmul %68, %69, %cst_22 {dimension_numbers = #tpu.dot_dimension_numbers<[1], [0], [0], [1], [0, 0, 1, 1], [], []>} : vector<24x640xbf16>, vector<640x128xbf16>, vector<24x128xf32> -> vector<24x128xf32>
    %71 = vector.broadcast %5 : vector<1x128xf32> to vector<24x128xf32>
    %72 = arith.addf %70, %71 : vector<24x128xf32>
    %cst_23 = arith.constant 0.000000e+00 : f32
    %73 = vector.broadcast %cst_23 : f32 to vector<24x128xf32>
    %74 = arith.maximumf %72, %73 : vector<24x128xf32>
    %75 = arith.truncf %74 : vector<24x128xf32> to vector<24x128xbf16>
    %76 = vector.shape_cast %75 : vector<24x128xbf16> to vector<3x8x128xbf16>
    %77 = vector.extract_strided_slice %76 {offsets = [0, 0, 0], sizes = [1, 8, 128], strides = [1, 1, 1]} : vector<3x8x128xbf16> to vector<1x8x128xbf16>
    %78 = vector.shape_cast %77 : vector<1x8x128xbf16> to vector<8x128xbf16>
    %79 = vector.extract_strided_slice %76 {offsets = [1, 0, 0], sizes = [1, 8, 128], strides = [1, 1, 1]} : vector<3x8x128xbf16> to vector<1x8x128xbf16>
    %80 = vector.shape_cast %79 : vector<1x8x128xbf16> to vector<8x128xbf16>
    %81 = vector.extract_strided_slice %76 {offsets = [2, 0, 0], sizes = [1, 8, 128], strides = [1, 1, 1]} : vector<3x8x128xbf16> to vector<1x8x128xbf16>
    %82 = vector.shape_cast %81 : vector<1x8x128xbf16> to vector<8x128xbf16>
    %83 = tpu.concatenate %78, %80, %82 in 1 : vector<8x128xbf16>, vector<8x128xbf16>, vector<8x128xbf16> -> vector<8x384xbf16>
    %c0_24 = arith.constant 0 : index
    %c0_25 = arith.constant 0 : index
    %84 = vector.load %arg7[%c0_24, %c0_25] : memref<384x128xbf16, #tpu.memory_space<vmem>>, vector<384x128xbf16>
    %cst_26 = arith.constant dense<0.000000e+00> : vector<8x128xf32>
    %85 = tpu.matmul %83, %84, %cst_26 {dimension_numbers = #tpu.dot_dimension_numbers<[1], [0], [0], [1], [0, 0, 1, 1], [], []>} : vector<8x384xbf16>, vector<384x128xbf16>, vector<8x128xf32> -> vector<8x128xf32>
    %86 = vector.broadcast %6 : vector<1x128xf32> to vector<8x128xf32>
    %87 = arith.addf %85, %86 : vector<8x128xf32>
    %c0_27 = arith.constant 0 : index
    %c0_28 = arith.constant 0 : index
    %88 = vector.load %arg9[%c0_27, %c0_28] : memref<8x128xf32, #tpu.memory_space<vmem>>, vector<8x128xf32>
    tpu.vector_store %arg9[%c0_27, %c0_28], %87 {strides = array<i32>} : memref<8x128xf32, #tpu.memory_space<vmem>>, vector<8x128xf32>,
    return
  }
  func.func @transform_0(%arg0: i32) -> (i32, i32, i32, i32) {
    %c0_i32 = arith.constant 0 : i32
    %c0_i32_0 = arith.constant 0 : i32
    %c0_i32_1 = arith.constant 0 : i32
    %c0_i32_2 = arith.constant 0 : i32
    return %c0_i32, %c0_i32_0, %arg0, %c0_i32_1 : i32, i32, i32, i32
  }
  func.func @transform_1(%arg0: i32) -> (i32, i32) {
    %c0_i32 = arith.constant 0 : i32
    %c0_i32_0 = arith.constant 0 : i32
    %c0_i32_1 = arith.constant 0 : i32
    return %c0_i32, %c0_i32_0 : i32, i32
  }
  func.func @transform_2(%arg0: i32) -> (i32, i32) {
    %c0_i32 = arith.constant 0 : i32
    %c0_i32_0 = arith.constant 0 : i32
    %c0_i32_1 = arith.constant 0 : i32
    return %c0_i32, %c0_i32_0 : i32, i32
  }
  func.func @transform_3(%arg0: i32) -> (i32, i32) {
    %c0_i32 = arith.constant 0 : i32
    %c0_i32_0 = arith.constant 0 : i32
    %c0_i32_1 = arith.constant 0 : i32
    return %c0_i32, %c0_i32_0 : i32, i32
  }
  func.func @transform_4(%arg0: i32) -> (i32, i32) {
    %c0_i32 = arith.constant 0 : i32
    %c0_i32_0 = arith.constant 0 : i32
    %c0_i32_1 = arith.constant 0 : i32
    return %c0_i32, %c0_i32_0 : i32, i32
  }
  func.func @transform_5(%arg0: i32) -> (i32, i32) {
    %c0_i32 = arith.constant 0 : i32
    %c0_i32_0 = arith.constant 0 : i32
    %c0_i32_1 = arith.constant 0 : i32
    return %c0_i32, %c0_i32_0 : i32, i32
  }
  func.func @transform_6(%arg0: i32) -> (i32, i32) {
    %c0_i32 = arith.constant 0 : i32
    %c0_i32_0 = arith.constant 0 : i32
    %c0_i32_1 = arith.constant 0 : i32
    return %c0_i32, %c0_i32_0 : i32, i32
  }
  func.func @transform_7(%arg0: i32) -> (i32, i32) {
    %c0_i32 = arith.constant 0 : i32
    %c0_i32_0 = arith.constant 0 : i32
    %c0_i32_1 = arith.constant 0 : i32
    return %c0_i32, %c0_i32_0 : i32, i32
  }
  func.func @transform_8(%arg0: i32) -> (i32, i32) {
    %c0_i32 = arith.constant 0 : i32
    %c0_i32_0 = arith.constant 0 : i32
    return %arg0, %c0_i32 : i32, i32
  }
}

</mosaic_0001>

<llo_original>
// kernel: tile.26
$region0: #{tile.26}
  #allocation0 [shape = 's32[1]{0}', space=sflag, size = 0x4, scoped, tag = 'scoped memory for tile.26']
  %s0 = inlined_call_operand.vmem [shape: f32[32], index: 0, kind: input, shape index: {}]
  %s1 = inlined_call_operand.vmem [shape: f32[4,32], index: 1, kind: output, shape index: {}]
  // Predicated region
  $region2: #{tile.26} parent=0 // pred_check
    _
  $region3: #{tile.26} parent=0 // pred_check_branch
    %3 = sbr.rel (0) target = $region5
  $region4: #{tile.26} parent=0 // pred_region
    _
  $region5: #{tile.26} parent=0 // pred_fallthru
    _
  %v4 = vld [vmem:[%s0] ss:$0 sm:$0xff]
  %5 = vst [vmem:[%s1] sm:$0xf] %v4

// kernel: tile.42
$region0: #{tile.42}
  %s0 = inlined_call_operand.vmem [shape: f32[4,32], index: 0, kind: input, shape index: {}]
  %s1 = inlined_call_operand.vmem [shape: f32[1,128], index: 1, kind: output, shape index: {}]
  $region1: #{tile.42} parent=0
    #allocation0 [shape = 'u8[4096]{0}', space=vmem, size = 0x1000, scoped, tag = 'scoped mem for output reshape']
    #allocation1 [shape = 'u8[4096]{0}', space=vmem, size = 0x1000, scoped, tag = 'scoped mem for input reshape']
    %s3 = sshll.u32 1, 4
    %s4 = ssub.s32 %s3, 1
    %v5 = vld [vmem:[%s0] sm:%s4]
    %6 = vst [vmem:[#allocation1] sm:%s4] %v5
    %v7 = vld [vmem:[#allocation1] sm:$0x1]
    %vm8 = vcmask 261120
    %9 = vst.msk [vmem:[#allocation0] sm:$0x1] %vm8, %v7
    %s10 = scalar_lea.vmem [#allocation1], 3
    %v11 = vld [vmem:[%s10] sm:$0x1]
    %12 = vrot.lane.b32.xlu0 %v11, 96
    %v13 = vpop.permute.xlu0 %12
    %vm14 = vcmask 1048320
    %15 = vst.msk [vmem:[#allocation0] sm:$0x1] %vm14, %v13
    %s16 = scalar_lea.vmem [#allocation1], 2
    %v17 = vld [vmem:[%s16] sm:$0x1]
    %18 = vrot.lane.b32.xlu0 %v17, 64
    %v19 = vpop.permute.xlu0 %18
    %vm20 = vcmask 785920
    %21 = vst.msk [vmem:[#allocation0] sm:$0x1] %vm20, %v19
    %s22 = scalar_lea.vmem [#allocation1], 1
    %v23 = vld [vmem:[%s22] sm:$0x1]
    %24 = vrot.lane.b32.xlu0 %v23, 32
    %v25 = vpop.permute.xlu0 %24
    %vm26 = vcmask 523520
    %27 = vst.msk [vmem:[#allocation0] sm:$0x1] %vm26, %v25
    %s29 = sshll.u32 1, 1
    %s30 = ssub.s32 %s29, 1
    %v32 = vld [vmem:[#allocation0] sm:%s30]
    %s33 = sshll.u32 1, 1
    %s34 = ssub.s32 %s33, 1
    %35 = vst [vmem:[%s1] sm:%s34] %v32

// kernel: forward.1
$region0: #{forward.1}
  #allocation0 [shape = 'u32[]', space=smem, size = 0x4, offset = 0x4, fixed_abs, tag = 'smem constant byte address 0x4 - core index']
  #allocation1 [shape = 'u32[144,128]{1,0:T(1,128)}', space=vmem, size = 0x12000, scoped, tag = 'internal scratch']
  %s0 = inlined_call_operand.vmem [shape: bf16[2,15,8,128], index: 0, kind: input, shape index: {}]
  %s1 = inlined_call_operand.vmem [shape: bf16[128,128], index: 1, kind: input, shape index: {}]
  %s2 = inlined_call_operand.vmem [shape: bf16[128,128], index: 2, kind: input, shape index: {}]
  %s3 = inlined_call_operand.vmem [shape: bf16[1152,128], index: 3, kind: input, shape index: {}]
  %s4 = inlined_call_operand.vmem [shape: bf16[640,128], index: 4, kind: input, shape index: {}]
  %s5 = inlined_call_operand.vmem [shape: bf16[640,128], index: 5, kind: input, shape index: {}]
  %s6 = inlined_call_operand.vmem [shape: bf16[384,128], index: 6, kind: input, shape index: {}]
  %s7 = inlined_call_operand.vmem [shape: f32[8,128], index: 7, kind: input, shape index: {}]
  %s8 = inlined_call_operand.vmem [shape: f32[8,128], index: 8, kind: output, shape index: {}]
  %s9 = sld [smem:[#allocation0]]
  $region42: #{forward.1} parent=0
    _
  %s11 = ssub.s32 1, %s9
  %s12 = scalar_select 0, %s11, %s9
  // Predicated region
  $region2: #{forward.1} parent=0 // pred_check
    _
  $region3: #{forward.1} parent=0 // pred_check_branch
    %14 = sbr.rel (0) target = $region5
  $region4: #{forward.1} parent=0 // pred_region
    _
  $region5: #{forward.1} parent=0 // pred_fallthru
    _
  // Predicated region
  $region6: #{forward.1} parent=0 // pred_check
    _
  $region7: #{forward.1} parent=0 // pred_check_branch
    %16 = sbr.rel (0) target = $region9
  $region8: #{forward.1} parent=0 // pred_region
    _
  $region9: #{forward.1} parent=0 // pred_fallthru
    _
  // Predicated region
  $region10: #{forward.1} parent=0 // pred_check
    _
  $region11: #{forward.1} parent=0 // pred_check_branch
    %18 = sbr.rel (0) target = $region13
  $region12: #{forward.1} parent=0 // pred_region
    _
  $region13: #{forward.1} parent=0 // pred_fallthru
    _
  // Predicated region
  $region14: #{forward.1} parent=0 // pred_check
    _
  $region15: #{forward.1} parent=0 // pred_check_branch
    %20 = sbr.rel (0) target = $region17
  $region16: #{forward.1} parent=0 // pred_region
    _
  $region17: #{forward.1} parent=0 // pred_fallthru
    _
  // Predicated region
  $region18: #{forward.1} parent=0 // pred_check
    _
  $region19: #{forward.1} parent=0 // pred_check_branch
    %22 = sbr.rel (0) target = $region21
  $region20: #{forward.1} parent=0 // pred_region
    _
  $region21: #{forward.1} parent=0 // pred_fallthru
    _
  // Predicated region
  $region22: #{forward.1} parent=0 // pred_check
    _
  $region23: #{forward.1} parent=0 // pred_check_branch
    %24 = sbr.rel (0) target = $region25
  $region24: #{forward.1} parent=0 // pred_region
    _
  $region25: #{forward.1} parent=0 // pred_fallthru
    _
  // Predicated region
  $region26: #{forward.1} parent=0 // pred_check
    _
  $region27: #{forward.1} parent=0 // pred_check_branch
    %26 = sbr.rel (0) target = $region29
  $region28: #{forward.1} parent=0 // pred_region
    _
  $region29: #{forward.1} parent=0 // pred_fallthru
    _
  // Predicated region
  $region30: #{forward.1} parent=0 // pred_check
    _
  $region31: #{forward.1} parent=0 // pred_check_branch
    %28 = sbr.rel (0) target = $region33
  $region32: #{forward.1} parent=0 // pred_region
    _
  $region33: #{forward.1} parent=0 // pred_fallthru
    _
  %v30 = vld [vmem:[%s7] sm:$0xff]
  %v31 = vld [vmem:[%s0] sm:$0xf]
  %v32 = vld [vmem:[%s0 + $0x4] sm:$0xf]
  %v33 = vld [vmem:[%s0 + $0x8] sm:$0xf]
  %v34 = vld [vmem:[%s0 + $0xc] sm:$0xf]
  %v35 = vld [vmem:[%s0 + $0x10] sm:$0xf]
  %v36 = vld [vmem:[%s0 + $0x14] sm:$0xf]
  %v37 = vld [vmem:[%s0 + $0x18] sm:$0xf]
  %v38 = vld [vmem:[%s0 + $0x1c] sm:$0xf]
  %v39 = vld [vmem:[%s0 + $0x20] sm:$0xf]
  %v40 = vld [vmem:[%s0 + $0x24] sm:$0xf]
  %v41 = vld [vmem:[%s0 + $0x28] sm:$0xf]
  %v42 = vld [vmem:[%s0 + $0x2c] sm:$0xf]
  %v43 = vld [vmem:[%s0 + $0x30] sm:$0xf]
  %v44 = vld [vmem:[%s0 + $0x34] sm:$0xf]
  %v45 = vld [vmem:[%s0 + $0x38] sm:$0xf]
  %v46 = vld [vmem:[%s0 + $0x3c] sm:$0xf]
  %v47 = vld [vmem:[%s0 + $0x40] sm:$0xf]
  %v48 = vld [vmem:[%s0 + $0x44] sm:$0xf]
  %v49 = vld [vmem:[%s0 + $0x48] sm:$0xf]
  %v50 = vld [vmem:[%s0 + $0x4c] sm:$0xf]
  %v51 = vld [vmem:[%s0 + $0x50] sm:$0xf]
  %v52 = vld [vmem:[%s0 + $0x54] sm:$0xf]
  %v53 = vld [vmem:[%s0 + $0x58] sm:$0xf]
  %v54 = vld [vmem:[%s0 + $0x5c] sm:$0xf]
  %v55 = vld [vmem:[%s0 + $0x60] sm:$0xf]
  %v56 = vld [vmem:[%s0 + $0x64] sm:$0xf]
  %v57 = vld [vmem:[%s0 + $0x68] sm:$0xf]
  %v58 = vld [vmem:[%s0 + $0x6c] sm:$0xf]
  %v59 = vld [vmem:[%s0 + $0x70] sm:$0xf]
  %v60 = vld [vmem:[%s0 + $0x74] sm:$0xf]
  %v61 = vld [vmem:[%s1] sm:$0xf]
  %v62 = vld [vmem:[%s1 + $0x4] sm:$0xf]
  %v63 = vld [vmem:[%s1 + $0x8] sm:$0xf]
  %v64 = vld [vmem:[%s1 + $0xc] sm:$0xf]
  %v65 = vld [vmem:[%s1 + $0x10] sm:$0xf]
  %v66 = vld [vmem:[%s1 + $0x14] sm:$0xf]
  %v67 = vld [vmem:[%s1 + $0x18] sm:$0xf]
  %v68 = vld [vmem:[%s1 + $0x1c] sm:$0xf]
  %v69 = vld [vmem:[%s1 + $0x20] sm:$0xf]
  %v70 = vld [vmem:[%s1 + $0x24] sm:$0xf]
  %v71 = vld [vmem:[%s1 + $0x28] sm:$0xf]
  %v72 = vld [vmem:[%s1 + $0x2c] sm:$0xf]
  %v73 = vld [vmem:[%s1 + $0x30] sm:$0xf]
  %v74 = vld [vmem:[%s1 + $0x34] sm:$0xf]
  %v75 = vld [vmem:[%s1 + $0x38] sm:$0xf]
  %v76 = vld [vmem:[%s1 + $0x3c] sm:$0xf]
  %v77 = vlaneseq
  %v78 = vshrl.u32 %v77, 7
  %v79 = vsub.s32 0, %v78
  %v80 = vrot.slane %v30, %v79
  %v111 = vunpack.c.l.b16 %v31
  %v112 = vunpack.c.l.b16 %v32
  %v113 = vunpack.c.l.b16 %v33
  %v114 = vunpack.c.l.b16 %v34
  %v115 = vunpack.c.l.b16 %v35
  %v116 = vunpack.c.l.b16 %v36
  %v117 = vunpack.c.l.b16 %v37
  %v118 = vunpack.c.l.b16 %v38
  %v119 = vunpack.c.l.b16 %v39
  %v120 = vunpack.c.l.b16 %v40
  %v121 = vunpack.c.l.b16 %v41
  %v122 = vunpack.c.l.b16 %v42
  %v123 = vunpack.c.l.b16 %v43
  %v124 = vunpack.c.l.b16 %v44
  %v125 = vunpack.c.l.b16 %v45
  %v126 = vunpack.c.l.b16 %v46
  %v127 = vunpack.c.l.b16 %v47
  %v128 = vunpack.c.l.b16 %v48
  %v129 = vunpack.c.l.b16 %v49
  %v130 = vunpack.c.l.b16 %v50
  %v131 = vunpack.c.l.b16 %v51
  %v132 = vunpack.c.l.b16 %v52
  %v133 = vunpack.c.l.b16 %v53
  %v134 = vunpack.c.l.b16 %v54
  %v135 = vunpack.c.l.b16 %v55
  %v136 = vunpack.c.l.b16 %v56
  %v137 = vunpack.c.l.b16 %v57
  %v138 = vunpack.c.l.b16 %v58
  %v139 = vunpack.c.l.b16 %v59
  %v140 = vunpack.c.l.b16 %v60
  %v141 = vpack.c.b16 %v112, %v111
  %v142 = vpack.c.b16 %v114, %v113
  %v143 = vpack.c.b16 %v116, %v115
  %v144 = vpack.c.b16 %v118, %v117
  %v145 = vpack.c.b16 %v120, %v119
  %v146 = vpack.c.b16 %v122, %v121
  %v147 = vpack.c.b16 %v124, %v123
  %v148 = vpack.c.b16 %v126, %v125
  %v149 = vpack.c.b16 %v128, %v127
  %v150 = vpack.c.b16 %v130, %v129
  %v151 = vpack.c.b16 %v132, %v131
  %v152 = vpack.c.b16 %v134, %v133
  %v153 = vpack.c.b16 %v136, %v135
  %v154 = vpack.c.b16 %v138, %v137
  %v155 = vpack.c.b16 %v140, %v139
  %v187 = vunpack.c.l.b16 %v61
  %v188 = vunpack.c.l.b16 %v62
  %v189 = vunpack.c.l.b16 %v63
  %v190 = vunpack.c.l.b16 %v64
  %v191 = vunpack.c.l.b16 %v65
  %v192 = vunpack.c.l.b16 %v66
  %v193 = vunpack.c.l.b16 %v67
  %v194 = vunpack.c.l.b16 %v68
  %v195 = vunpack.c.l.b16 %v69
  %v196 = vunpack.c.l.b16 %v70
  %v197 = vunpack.c.l.b16 %v71
  %v198 = vunpack.c.l.b16 %v72
  %v199 = vunpack.c.l.b16 %v73
  %v200 = vunpack.c.l.b16 %v74
  %v201 = vunpack.c.l.b16 %v75
  %v202 = vunpack.c.l.b16 %v76
  %v203 = vpack.c.b16 %v188, %v187
  %v204 = vpack.c.b16 %v190, %v189
  %v205 = vpack.c.b16 %v192, %v191
  %v206 = vpack.c.b16 %v194, %v193
  %v207 = vpack.c.b16 %v196, %v195
  %v208 = vpack.c.b16 %v198, %v197
  %v209 = vpack.c.b16 %v200, %v199
  %v210 = vpack.c.b16 %v202, %v201
  %219 = vmatprep.subr.bf16.mxu0 0
  %220 = vmatpush1.bf16.msra.mxu0 %v210
  %221 = vmatprep.subr.bf16.mxu0 0
  %222 = vmatpush1.bf16.msra.mxu0 %v209
  %223 = vmatprep.subr.bf16.mxu0 0
  %224 = vmatpush1.bf16.msra.mxu0 %v208
  %225 = vmatprep.subr.bf16.mxu0 0
  %226 = vmatpush1.bf16.msra.mxu0 %v207
  %227 = vmatprep.subr.bf16.mxu0 0
  %228 = vmatpush1.bf16.msra.mxu0 %v206
  %229 = vmatprep.subr.bf16.mxu0 0
  %230 = vmatpush1.bf16.msra.mxu0 %v205
  %231 = vmatprep.subr.bf16.mxu0 0
  %232 = vmatpush1.bf16.msra.mxu0 %v204
  %233 = vmatprep.subr.bf16.mxu0 0
  %234 = vmatpush1.bf16.msra.mxu0 %v203
  %235 = vmatprep.subr.bf16.mxu0 0
  %236 = vmatpush2.bf16.msra.mxu0 0
  %237 = vmatprep.subr.bf16.mxu0 0
  %238 = vmatpush2.bf16.msra.mxu0 0
  %239 = vmatprep.subr.bf16.mxu0 0
  %240 = vmatpush2.bf16.msra.mxu0 0
  %241 = vmatprep.subr.bf16.mxu0 0
  %242 = vmatpush2.bf16.msra.mxu0 0
  %243 = vmatprep.subr.bf16.mxu0 0
  %244 = vmatpush2.bf16.msra.mxu0 0
  %245 = vmatprep.subr.bf16.mxu0 0
  %246 = vmatpush2.bf16.msra.mxu0 0
  %247 = vmatprep.subr.bf16.mxu0 0
  %248 = vmatpush2.bf16.msra.mxu0 0
  %249 = vmatprep.subr.bf16.mxu0 0
  %250 = vmatpush2.bf16.msra.mxu0 0
  %251 = vmatprep.mubr.bf16.mxu0 0
  %252 = vmatmul.mubr.bf16.gmra.mxu0 %v141
  %v253 = vpop.f32.mrf.mxu0
  %v254 = vadd.f32 %v80, %v253
  %v255 = vpop.f32.mrf.mxu0
  %v256 = vpop.f32.mrf.mxu0
  %v257 = vadd.f32 %v80, %v256
  %v258 = vpop.f32.mrf.mxu0
  %259 = vmatprep.mubr.bf16.mxu0 0
  %260 = vmatmul.mubr.bf16.gmra.mxu0 %v142
  %v261 = vpop.f32.mrf.mxu0
  %v262 = vadd.f32 %v80, %v261
  %v263 = vpop.f32.mrf.mxu0
  %v264 = vpop.f32.mrf.mxu0
  %v265 = vadd.f32 %v80, %v264
  %v266 = vpop.f32.mrf.mxu0
  %267 = vmatprep.mubr.bf16.mxu0 0
  %268 = vmatmul.mubr.bf16.gmra.mxu0 %v143
  %v269 = vpop.f32.mrf.mxu0
  %v270 = vadd.f32 %v80, %v269
  %v271 = vpop.f32.mrf.mxu0
  %v272 = vpop.f32.mrf.mxu0
  %v273 = vadd.f32 %v80, %v272
  %v274 = vpop.f32.mrf.mxu0
  %275 = vmatprep.mubr.bf16.mxu0 0
  %276 = vmatmul.mubr.bf16.gmra.mxu0 %v144
  %v277 = vpop.f32.mrf.mxu0
  %v278 = vadd.f32 %v80, %v277
  %v279 = vpop.f32.mrf.mxu0
  %v280 = vpop.f32.mrf.mxu0
  %v281 = vadd.f32 %v80, %v280
  %v282 = vpop.f32.mrf.mxu0
  %283 = vmatprep.mubr.bf16.mxu0 0
  %284 = vmatmul.mubr.bf16.gmra.mxu0 %v145
  %v285 = vpop.f32.mrf.mxu0
  %v286 = vadd.f32 %v80, %v285
  %v287 = vpop.f32.mrf.mxu0
  %v288 = vpop.f32.mrf.mxu0
  %v289 = vadd.f32 %v80, %v288
  %v290 = vpop.f32.mrf.mxu0
  %291 = vmatprep.mubr.bf16.mxu0 0
  %292 = vmatmul.mubr.bf16.gmra.mxu0 %v146
  %v293 = vpop.f32.mrf.mxu0
  %v294 = vadd.f32 %v80, %v293
  %v295 = vpop.f32.mrf.mxu0
  %v296 = vpop.f32.mrf.mxu0
  %v297 = vadd.f32 %v80, %v296
  %v298 = vpop.f32.mrf.mxu0
  %299 = vmatprep.mubr.bf16.mxu0 0
  %300 = vmatmul.mubr.bf16.gmra.mxu0 %v147
  %v301 = vpop.f32.mrf.mxu0
  %v302 = vadd.f32 %v80, %v301
  %v303 = vpop.f32.mrf.mxu0
  %v304 = vpop.f32.mrf.mxu0
  %v305 = vadd.f32 %v80, %v304
  %v306 = vpop.f32.mrf.mxu0
  %307 = vmatprep.mubr.bf16.mxu0 0
  %308 = vmatmul.mubr.bf16.gmra.mxu0 %v148
  %v309 = vpop.f32.mrf.mxu0
  %v310 = vadd.f32 %v80, %v309
  %v311 = vpop.f32.mrf.mxu0
  %v312 = vpop.f32.mrf.mxu0
  %v313 = vadd.f32 %v80, %v312
  %v314 = vpop.f32.mrf.mxu0
  %315 = vmatprep.mubr.bf16.mxu0 0
  %316 = vmatmul.mubr.bf16.gmra.mxu0 %v149
  %v317 = vpop.f32.mrf.mxu0
  %v318 = vadd.f32 %v80, %v317
  %v319 = vpop.f32.mrf.mxu0
  %v320 = vpop.f32.mrf.mxu0
  %v321 = vadd.f32 %v80, %v320
  %v322 = vpop.f32.mrf.mxu0
  %323 = vmatprep.mubr.bf16.mxu0 0
  %324 = vmatmul.mubr.bf16.gmra.mxu0 %v150
  %v325 = vpop.f32.mrf.mxu0
  %v326 = vadd.f32 %v80, %v325
  %v327 = vpop.f32.mrf.mxu0
  %v328 = vpop.f32.mrf.mxu0
  %v329 = vadd.f32 %v80, %v328
  %v330 = vpop.f32.mrf.mxu0
  %331 = vmatprep.mubr.bf16.mxu0 0
  %332 = vmatmul.mubr.bf16.gmra.mxu0 %v151
  %v333 = vpop.f32.mrf.mxu0
  %v334 = vadd.f32 %v80, %v333
  %v335 = vpop.f32.mrf.mxu0
  %v336 = vpop.f32.mrf.mxu0
  %v337 = vadd.f32 %v80, %v336
  %v338 = vpop.f32.mrf.mxu0
  %339 = vmatprep.mubr.bf16.mxu0 0
  %340 = vmatmul.mubr.bf16.gmra.mxu0 %v152
  %v341 = vpop.f32.mrf.mxu0
  %v342 = vadd.f32 %v80, %v341
  %v343 = vpop.f32.mrf.mxu0
  %v344 = vpop.f32.mrf.mxu0
  %v345 = vadd.f32 %v80, %v344
  %v346 = vpop.f32.mrf.mxu0
  %347 = vmatprep.mubr.bf16.mxu0 0
  %348 = vmatmul.mubr.bf16.gmra.mxu0 %v153
  %v349 = vpop.f32.mrf.mxu0
  %v350 = vadd.f32 %v80, %v349
  %v351 = vpop.f32.mrf.mxu0
  %v352 = vpop.f32.mrf.mxu0
  %v353 = vadd.f32 %v80, %v352
  %v354 = vpop.f32.mrf.mxu0
  %355 = vmatprep.mubr.bf16.mxu0 0
  %356 = vmatmul.mubr.bf16.gmra.mxu0 %v154
  %v357 = vpop.f32.mrf.mxu0
  %v358 = vadd.f32 %v80, %v357
  %v359 = vpop.f32.mrf.mxu0
  %v360 = vpop.f32.mrf.mxu0
  %v361 = vadd.f32 %v80, %v360
  %v362 = vpop.f32.mrf.mxu0
  %363 = vmatprep.mubr.bf16.mxu0 0
  %364 = vmatmul.mubr.bf16.gmra.mxu0 %v155
  %v365 = vpop.f32.mrf.mxu0
  %v366 = vadd.f32 %v80, %v365
  %v367 = vpop.f32.mrf.mxu0
  %v368 = vpop.f32.mrf.mxu0
  %v369 = vadd.f32 %v80, %v368
  %v370 = vpop.f32.mrf.mxu0
  %371 = vdwg.mxu0
  %v372 = vmax.f32 %v254, 0.0
  %v373 = vmax.f32 %v257, 0.0
  %v374 = vmax.f32 %v262, 0.0
  %v375 = vmax.f32 %v265, 0.0
  %v376 = vmax.f32 %v270, 0.0
  %v377 = vmax.f32 %v273, 0.0
  %v378 = vmax.f32 %v278, 0.0
  %v379 = vmax.f32 %v281, 0.0
  %v380 = vmax.f32 %v286, 0.0
  %v381 = vmax.f32 %v289, 0.0
  %v382 = vmax.f32 %v294, 0.0
  %v383 = vmax.f32 %v297, 0.0
  %v384 = vmax.f32 %v302, 0.0
  %v385 = vmax.f32 %v305, 0.0
  %v386 = vmax.f32 %v310, 0.0
  %v387 = vmax.f32 %v313, 0.0
  %v388 = vmax.f32 %v318, 0.0
  %v389 = vmax.f32 %v321, 0.0
  %v390 = vmax.f32 %v326, 0.0
  %v391 = vmax.f32 %v329, 0.0
  %v392 = vmax.f32 %v334, 0.0
  %v393 = vmax.f32 %v337, 0.0
  %v394 = vmax.f32 %v342, 0.0
  %v395 = vmax.f32 %v345, 0.0
  %v396 = vmax.f32 %v350, 0.0
  %v397 = vmax.f32 %v353, 0.0
  %v398 = vmax.f32 %v358, 0.0
  %v399 = vmax.f32 %v361, 0.0
  %v400 = vmax.f32 %v366, 0.0
  %v401 = vmax.f32 %v369, 0.0
  %v402 = vpack.c.bf16 %v373, %v372
  %v403 = vpack.c.bf16 %v375, %v374
  %v404 = vpack.c.bf16 %v377, %v376
  %v405 = vpack.c.bf16 %v379, %v378
  %v406 = vpack.c.bf16 %v381, %v380
  %v407 = vpack.c.bf16 %v383, %v382
  %v408 = vpack.c.bf16 %v385, %v384
  %v409 = vpack.c.bf16 %v387, %v386
  %v410 = vpack.c.bf16 %v389, %v388
  %v411 = vpack.c.bf16 %v391, %v390
  %v412 = vpack.c.bf16 %v393, %v392
  %v413 = vpack.c.bf16 %v395, %v394
  %v414 = vpack.c.bf16 %v397, %v396
  %v415 = vpack.c.bf16 %v399, %v398
  %v416 = vpack.c.bf16 %v401, %v400
  %v417 = vld [vmem:[%s2] sm:$0xf]
  %v418 = vld [vmem:[%s2 + $0x4] sm:$0xf]
  %v419 = vld [vmem:[%s2 + $0x8] sm:$0xf]
  %v420 = vld [vmem:[%s2 + $0xc] sm:$0xf]
  %v421 = vld [vmem:[%s2 + $0x10] sm:$0xf]
  %v422 = vld [vmem:[%s2 + $0x14] sm:$0xf]
  %v423 = vld [vmem:[%s2 + $0x18] sm:$0xf]
  %v424 = vld [vmem:[%s2 + $0x1c] sm:$0xf]
  %v425 = vld [vmem:[%s2 + $0x20] sm:$0xf]
  %v426 = vld [vmem:[%s2 + $0x24] sm:$0xf]
  %v427 = vld [vmem:[%s2 + $0x28] sm:$0xf]
  %v428 = vld [vmem:[%s2 + $0x2c] sm:$0xf]
  %v429 = vld [vmem:[%s2 + $0x30] sm:$0xf]
  %v430 = vld [vmem:[%s2 + $0x34] sm:$0xf]
  %v431 = vld [vmem:[%s2 + $0x38] sm:$0xf]
  %v432 = vld [vmem:[%s2 + $0x3c] sm:$0xf]
  %v433 = vlaneseq
  %v434 = vshrl.u32 %v433, 7
  %v435 = vsub.s32 1, %v434
  %v436 = vrot.slane %v30, %v435
  %v453 = vunpack.c.l.b16 %v417
  %v454 = vunpack.c.l.b16 %v418
  %v455 = vunpack.c.l.b16 %v419
  %v456 = vunpack.c.l.b16 %v420
  %v457 = vunpack.c.l.b16 %v421
  %v458 = vunpack.c.l.b16 %v422
  %v459 = vunpack.c.l.b16 %v423
  %v460 = vunpack.c.l.b16 %v424
  %v461 = vunpack.c.l.b16 %v425
  %v462 = vunpack.c.l.b16 %v426
  %v463 = vunpack.c.l.b16 %v427
  %v464 = vunpack.c.l.b16 %v428
  %v465 = vunpack.c.l.b16 %v429
  %v466 = vunpack.c.l.b16 %v430
  %v467 = vunpack.c.l.b16 %v431
  %v468 = vunpack.c.l.b16 %v432
  %v469 = vpack.c.b16 %v454, %v453
  %v470 = vpack.c.b16 %v456, %v455
  %v471 = vpack.c.b16 %v458, %v457
  %v472 = vpack.c.b16 %v460, %v459
  %v473 = vpack.c.b16 %v462, %v461
  %v474 = vpack.c.b16 %v464, %v463
  %v475 = vpack.c.b16 %v466, %v465
  %v476 = vpack.c.b16 %v468, %v467
  %485 = vmatprep.subr.bf16.mxu0 0
  %486 = vmatpush1.bf16.msra.mxu0 %v476
  %487 = vmatprep.subr.bf16.mxu0 0
  %488 = vmatpush1.bf16.msra.mxu0 %v475
  %489 = vmatprep.subr.bf16.mxu0 0
  %490 = vmatpush1.bf16.msra.mxu0 %v474
  %491 = vmatprep.subr.bf16.mxu0 0
  %492 = vmatpush1.bf16.msra.mxu0 %v473
  %493 = vmatprep.subr.bf16.mxu0 0
  %494 = vmatpush1.bf16.msra.mxu0 %v472
  %495 = vmatprep.subr.bf16.mxu0 0
  %496 = vmatpush1.bf16.msra.mxu0 %v471
  %497 = vmatprep.subr.bf16.mxu0 0
  %498 = vmatpush1.bf16.msra.mxu0 %v470
  %499 = vmatprep.subr.bf16.mxu0 0
  %500 = vmatpush1.bf16.msra.mxu0 %v469
  %501 = vmatprep.subr.bf16.mxu0 0
  %502 = vmatpush2.bf16.msra.mxu0 0
  %503 = vmatprep.subr.bf16.mxu0 0
  %504 = vmatpush2.bf16.msra.mxu0 0
  %505 = vmatprep.subr.bf16.mxu0 0
  %506 = vmatpush2.bf16.msra.mxu0 0
  %507 = vmatprep.subr.bf16.mxu0 0
  %508 = vmatpush2.bf16.msra.mxu0 0
  %509 = vmatprep.subr.bf16.mxu0 0
  %510 = vmatpush2.bf16.msra.mxu0 0
  %511 = vmatprep.subr.bf16.mxu0 0
  %512 = vmatpush2.bf16.msra.mxu0 0
  %513 = vmatprep.subr.bf16.mxu0 0
  %514 = vmatpush2.bf16.msra.mxu0 0
  %515 = vmatprep.subr.bf16.mxu0 0
  %516 = vmatpush2.bf16.msra.mxu0 0
  %517 = vmatprep.mubr.bf16.mxu0 0
  %518 = vmatmul.mubr.bf16.gmra.mxu0 %v402
  %v519 = vpop.f32.mrf.mxu0
  %v520 = vadd.f32 %v436, %v519
  %v521 = vpop.f32.mrf.mxu0
  %v522 = vpop.f32.mrf.mxu0
  %v523 = vadd.f32 %v436, %v522
  %v524 = vpop.f32.mrf.mxu0
  %525 = vmatprep.mubr.bf16.mxu0 0
  %526 = vmatmul.mubr.bf16.gmra.mxu0 %v403
  %v527 = vpop.f32.mrf.mxu0
  %v528 = vadd.f32 %v436, %v527
  %v529 = vpop.f32.mrf.mxu0
  %v530 = vpop.f32.mrf.mxu0
  %v531 = vadd.f32 %v436, %v530
  %v532 = vpop.f32.mrf.mxu0
  %533 = vmatprep.mubr.bf16.mxu0 0
  %534 = vmatmul.mubr.bf16.gmra.mxu0 %v404
  %v535 = vpop.f32.mrf.mxu0
  %v536 = vadd.f32 %v436, %v535
  %v537 = vpop.f32.mrf.mxu0
  %v538 = vpop.f32.mrf.mxu0
  %v539 = vadd.f32 %v436, %v538
  %v540 = vpop.f32.mrf.mxu0
  %541 = vmatprep.mubr.bf16.mxu0 0
  %542 = vmatmul.mubr.bf16.gmra.mxu0 %v405
  %v543 = vpop.f32.mrf.mxu0
  %v544 = vadd.f32 %v436, %v543
  %v545 = vpop.f32.mrf.mxu0
  %v546 = vpop.f32.mrf.mxu0
  %v547 = vadd.f32 %v436, %v546
  %v548 = vpop.f32.mrf.mxu0
  %549 = vmatprep.mubr.bf16.mxu0 0
  %550 = vmatmul.mubr.bf16.gmra.mxu0 %v406
  %v551 = vpop.f32.mrf.mxu0
  %v552 = vadd.f32 %v436, %v551
  %v553 = vpop.f32.mrf.mxu0
  %v554 = vpop.f32.mrf.mxu0
  %v555 = vadd.f32 %v436, %v554
  %v556 = vpop.f32.mrf.mxu0
  %557 = vmatprep.mubr.bf16.mxu0 0
  %558 = vmatmul.mubr.bf16.gmra.mxu0 %v407
  %v559 = vpop.f32.mrf.mxu0
  %v560 = vadd.f32 %v436, %v559
  %v561 = vpop.f32.mrf.mxu0
  %v562 = vpop.f32.mrf.mxu0
  %v563 = vadd.f32 %v436, %v562
  %v564 = vpop.f32.mrf.mxu0
  %565 = vmatprep.mubr.bf16.mxu0 0
  %566 = vmatmul.mubr.bf16.gmra.mxu0 %v408
  %v567 = vpop.f32.mrf.mxu0
  %v568 = vadd.f32 %v436, %v567
  %v569 = vpop.f32.mrf.mxu0
  %v570 = vpop.f32.mrf.mxu0
  %v571 = vadd.f32 %v436, %v570
  %v572 = vpop.f32.mrf.mxu0
  %573 = vmatprep.mubr.bf16.mxu0 0
  %574 = vmatmul.mubr.bf16.gmra.mxu0 %v409
  %v575 = vpop.f32.mrf.mxu0
  %v576 = vadd.f32 %v436, %v575
  %v577 = vpop.f32.mrf.mxu0
  %v578 = vpop.f32.mrf.mxu0
  %v579 = vadd.f32 %v436, %v578
  %v580 = vpop.f32.mrf.mxu0
  %581 = vmatprep.mubr.bf16.mxu0 0
  %582 = vmatmul.mubr.bf16.gmra.mxu0 %v410
  %v583 = vpop.f32.mrf.mxu0
  %v584 = vadd.f32 %v436, %v583
  %v585 = vpop.f32.mrf.mxu0
  %v586 = vpop.f32.mrf.mxu0
  %v587 = vadd.f32 %v436, %v586
  %v588 = vpop.f32.mrf.mxu0
  %589 = vmatprep.mubr.bf16.mxu0 0
  %590 = vmatmul.mubr.bf16.gmra.mxu0 %v411
  %v591 = vpop.f32.mrf.mxu0
  %v592 = vadd.f32 %v436, %v591
  %v593 = vpop.f32.mrf.mxu0
  %v594 = vpop.f32.mrf.mxu0
  %v595 = vadd.f32 %v436, %v594
  %v596 = vpop.f32.mrf.mxu0
  %597 = vmatprep.mubr.bf16.mxu0 0
  %598 = vmatmul.mubr.bf16.gmra.mxu0 %v412
  %v599 = vpop.f32.mrf.mxu0
  %v600 = vadd.f32 %v436, %v599
  %v601 = vpop.f32.mrf.mxu0
  %v602 = vpop.f32.mrf.mxu0
  %v603 = vadd.f32 %v436, %v602
  %v604 = vpop.f32.mrf.mxu0
  %605 = vmatprep.mubr.bf16.mxu0 0
  %606 = vmatmul.mubr.bf16.gmra.mxu0 %v413
  %v607 = vpop.f32.mrf.mxu0
  %v608 = vadd.f32 %v436, %v607
  %v609 = vpop.f32.mrf.mxu0
  %v610 = vpop.f32.mrf.mxu0
  %v611 = vadd.f32 %v436, %v610
  %v612 = vpop.f32.mrf.mxu0
  %613 = vmatprep.mubr.bf16.mxu0 0
  %614 = vmatmul.mubr.bf16.gmra.mxu0 %v414
  %v615 = vpop.f32.mrf.mxu0
  %v616 = vadd.f32 %v436, %v615
  %v617 = vpop.f32.mrf.mxu0
  %v618 = vpop.f32.mrf.mxu0
  %v619 = vadd.f32 %v436, %v618
  %v620 = vpop.f32.mrf.mxu0
  %621 = vmatprep.mubr.bf16.mxu0 0
  %622 = vmatmul.mubr.bf16.gmra.mxu0 %v415
  %v623 = vpop.f32.mrf.mxu0
  %v624 = vadd.f32 %v436, %v623
  %v625 = vpop.f32.mrf.mxu0
  %v626 = vpop.f32.mrf.mxu0
  %v627 = vadd.f32 %v436, %v626
  %v628 = vpop.f32.mrf.mxu0
  %629 = vmatprep.mubr.bf16.mxu0 0
  %630 = vmatmul.mubr.bf16.gmra.mxu0 %v416
  %v631 = vpop.f32.mrf.mxu0
  %v632 = vadd.f32 %v436, %v631
  %v633 = vpop.f32.mrf.mxu0
  %v634 = vpop.f32.mrf.mxu0
  %v635 = vadd.f32 %v436, %v634
  %v636 = vpop.f32.mrf.mxu0
  %637 = vdwg.mxu0
  %v638 = vmax.f32 %v520, 0.0
  %v639 = vmax.f32 %v523, 0.0
  %v640 = vmax.f32 %v528, 0.0
  %v641 = vmax.f32 %v531, 0.0
  %v642 = vmax.f32 %v536, 0.0
  %v643 = vmax.f32 %v539, 0.0
  %v644 = vmax.f32 %v544, 0.0
  %v645 = vmax.f32 %v547, 0.0
  %v646 = vmax.f32 %v552, 0.0
  %v647 = vmax.f32 %v555, 0.0
  %v648 = vmax.f32 %v560, 0.0
  %v649 = vmax.f32 %v563, 0.0
  %v650 = vmax.f32 %v568, 0.0
  %v651 = vmax.f32 %v571, 0.0
  %v652 = vmax.f32 %v576, 0.0
  %v653 = vmax.f32 %v579, 0.0
  %v654 = vmax.f32 %v584, 0.0
  %v655 = vmax.f32 %v587, 0.0
  %v656 = vmax.f32 %v592, 0.0
  %v657 = vmax.f32 %v595, 0.0
  %v658 = vmax.f32 %v600, 0.0
  %v659 = vmax.f32 %v603, 0.0
  %v660 = vmax.f32 %v608, 0.0
  %v661 = vmax.f32 %v611, 0.0
  %v662 = vmax.f32 %v616, 0.0
  %v663 = vmax.f32 %v619, 0.0
  %v664 = vmax.f32 %v624, 0.0
  %v665 = vmax.f32 %v627, 0.0
  %v666 = vmax.f32 %v632, 0.0
  %v667 = vmax.f32 %v635, 0.0
  %v668 = vpack.c.bf16 %v639, %v638
  %v669 = vpack.c.bf16 %v641, %v640
  %v670 = vpack.c.bf16 %v643, %v642
  %v671 = vpack.c.bf16 %v645, %v644
  %v672 = vpack.c.bf16 %v647, %v646
  %v673 = vpack.c.bf16 %v649, %v648
  %v674 = vpack.c.bf16 %v651, %v650
  %v675 = vpack.c.bf16 %v653, %v652
  %v676 = vpack.c.bf16 %v655, %v654
  %v677 = vpack.c.bf16 %v657, %v656
  %v678 = vpack.c.bf16 %v659, %v658
  %v679 = vpack.c.bf16 %v661, %v660
  %v680 = vpack.c.bf16 %v663, %v662
  %v681 = vpack.c.bf16 %v665, %v664
  %v682 = vpack.c.bf16 %v667, %v666
  %v698 = vunpack.c.l.b16 %v668
  %v699 = vunpack.c.h.b16 %v668
  %v700 = vunpack.c.l.b16 %v669
  %v701 = vunpack.c.h.b16 %v669
  %v702 = vunpack.c.l.b16 %v670
  %v703 = vunpack.c.h.b16 %v670
  %v704 = vunpack.c.l.b16 %v671
  %v705 = vunpack.c.h.b16 %v671
  %v706 = vunpack.c.l.b16 %v672
  %v707 = vunpack.c.h.b16 %v672
  %v708 = vunpack.c.l.b16 %v673
  %v709 = vunpack.c.h.b16 %v673
  %v710 = vunpack.c.l.b16 %v674
  %v711 = vunpack.c.h.b16 %v674
  %v712 = vunpack.c.l.b16 %v675
  %v713 = vunpack.c.h.b16 %v675
  %v714 = vunpack.c.l.b16 %v676
  %v715 = vunpack.c.h.b16 %v676
  %v716 = vunpack.c.l.b16 %v677
  %v717 = vunpack.c.h.b16 %v677
  %v718 = vunpack.c.l.b16 %v678
  %v719 = vunpack.c.h.b16 %v678
  %v720 = vunpack.c.l.b16 %v679
  %v721 = vunpack.c.h.b16 %v679
  %v722 = vunpack.c.l.b16 %v680
  %v723 = vunpack.c.h.b16 %v680
  %v724 = vunpack.c.l.b16 %v681
  %v725 = vunpack.c.h.b16 %v681
  %v726 = vunpack.c.l.b16 %v682
  %v727 = vld [vmem:[%s3] sm:$0xf]
  %v728 = vld [vmem:[%s3 + $0x4] sm:$0xf]
  %v729 = vld [vmem:[%s3 + $0x8] sm:$0xf]
  %v730 = vld [vmem:[%s3 + $0xc] sm:$0xf]
  %v731 = vld [vmem:[%s3 + $0x10] sm:$0xf]
  %v732 = vld [vmem:[%s3 + $0x14] sm:$0xf]
  %v733 = vld [vmem:[%s3 + $0x18] sm:$0xf]
  %v734 = vld [vmem:[%s3 + $0x1c] sm:$0xf]
  %v735 = vld [vmem:[%s3 + $0x20] sm:$0xf]
  %v736 = vld [vmem:[%s3 + $0x24] sm:$0xf]
  %v737 = vld [vmem:[%s3 + $0x28] sm:$0xf]
  %v738 = vld [vmem:[%s3 + $0x2c] sm:$0xf]
  %v739 = vld [vmem:[%s3 + $0x30] sm:$0xf]
  %v740 = vld [vmem:[%s3 + $0x34] sm:$0xf]
  %v741 = vld [vmem:[%s3 + $0x38] sm:$0xf]
  %v742 = vld [vmem:[%s3 + $0x3c] sm:$0xf]
  %v743 = vld [vmem:[%s3 + $0x40] sm:$0xf]
  %v744 = vld [vmem:[%s3 + $0x44] sm:$0xf]
  %v745 = vld [vmem:[%s3 + $0x48] sm:$0xf]
  %v746 = vld [vmem:[%s3 + $0x4c] sm:$0xf]
  %v747 = vld [vmem:[%s3 + $0x50] sm:$0xf]
  %v748 = vld [vmem:[%s3 + $0x54] sm:$0xf]
  %v749 = vld [vmem:[%s3 + $0x58] sm:$0xf]
  %v750 = vld [vmem:[%s3 + $0x5c] sm:$0xf]
  %v751 = vld [vmem:[%s3 + $0x60] sm:$0xf]
  %v752 = vld [vmem:[%s3 + $0x64] sm:$0xf]
  %v753 = vld [vmem:[%s3 + $0x68] sm:$0xf]
  %v754 = vld [vmem:[%s3 + $0x6c] sm:$0xf]
  %v755 = vld [vmem:[%s3 + $0x70] sm:$0xf]
  %v756 = vld [vmem:[%s3 + $0x74] sm:$0xf]
  %v757 = vld [vmem:[%s3 + $0x78] sm:$0xf]
  %v758 = vld [vmem:[%s3 + $0x7c] sm:$0xf]
  %v759 = vld [vmem:[%s3 + $0x80] sm:$0xf]
  %v760 = vld [vmem:[%s3 + $0x84] sm:$0xf]
  %v761 = vld [vmem:[%s3 + $0x88] sm:$0xf]
  %v762 = vld [vmem:[%s3 + $0x8c] sm:$0xf]
  %v763 = vld [vmem:[%s3 + $0x90] sm:$0xf]
  %v764 = vld [vmem:[%s3 + $0x94] sm:$0xf]
  %v765 = vld [vmem:[%s3 + $0x98] sm:$0xf]
  %v766 = vld [vmem:[%s3 + $0x9c] sm:$0xf]
  %v767 = vld [vmem:[%s3 + $0xa0] sm:$0xf]
  %v768 = vld [vmem:[%s3 + $0xa4] sm:$0xf]
  %v769 = vld [vmem:[%s3 + $0xa8] sm:$0xf]
  %v770 = vld [vmem:[%s3 + $0xac] sm:$0xf]
  %v771 = vld [vmem:[%s3 + $0xb0] sm:$0xf]
  %v772 = vld [vmem:[%s3 + $0xb4] sm:$0xf]
  %v773 = vld [vmem:[%s3 + $0xb8] sm:$0xf]
  %v774 = vld [vmem:[%s3 + $0xbc] sm:$0xf]
  %v775 = vld [vmem:[%s3 + $0xc0] sm:$0xf]
  %v776 = vld [vmem:[%s3 + $0xc4] sm:$0xf]
  %v777 = vld [vmem:[%s3 + $0xc8] sm:$0xf]
  %v778 = vld [vmem:[%s3 + $0xcc] sm:$0xf]
  %v779 = vld [vmem:[%s3 + $0xd0] sm:$0xf]
  %v780 = vld [vmem:[%s3 + $0xd4] sm:$0xf]
  %v781 = vld [vmem:[%s3 + $0xd8] sm:$0xf]
  %v782 = vld [vmem:[%s3 + $0xdc] sm:$0xf]
  %v783 = vld [vmem:[%s3 + $0xe0] sm:$0xf]
  %v784 = vld [vmem:[%s3 + $0xe4] sm:$0xf]
  %v785 = vld [vmem:[%s3 + $0xe8] sm:$0xf]
  %v786 = vld [vmem:[%s3 + $0xec] sm:$0xf]
  %v787 = vld [vmem:[%s3 + $0xf0] sm:$0xf]
  %v788 = vld [vmem:[%s3 + $0xf4] sm:$0xf]
  %v789 = vld [vmem:[%s3 + $0xf8] sm:$0xf]
  %v790 = vld [vmem:[%s3 + $0xfc] sm:$0xf]
  %v791 = vld [vmem:[%s3 + $0x100] sm:$0xf]
  %v792 = vld [vmem:[%s3 + $0x104] sm:$0xf]
  %v793 = vld [vmem:[%s3 + $0x108] sm:$0xf]
  %v794 = vld [vmem:[%s3 + $0x10c] sm:$0xf]
  %v795 = vld [vmem:[%s3 + $0x110] sm:$0xf]
  %v796 = vld [vmem:[%s3 + $0x114] sm:$0xf]
  %v797 = vld [vmem:[%s3 + $0x118] sm:$0xf]
  %v798 = vld [vmem:[%s3 + $0x11c] sm:$0xf]
  %v799 = vld [vmem:[%s3 + $0x120] sm:$0xf]
  %v800 = vld [vmem:[%s3 + $0x124] sm:$0xf]
  %v801 = vld [vmem:[%s3 + $0x128] sm:$0xf]
  %v802 = vld [vmem:[%s3 + $0x12c] sm:$0xf]
  %v803 = vld [vmem:[%s3 + $0x130] sm:$0xf]
  %v804 = vld [vmem:[%s3 + $0x134] sm:$0xf]
  %v805 = vld [vmem:[%s3 + $0x138] sm:$0xf]
  %v806 = vld [vmem:[%s3 + $0x13c] sm:$0xf]
  %v807 = vld [vmem:[%s3 + $0x140] sm:$0xf]
  %v808 = vld [vmem:[%s3 + $0x144] sm:$0xf]
  %v809 = vld [vmem:[%s3 + $0x148] sm:$0xf]
  %v810 = vld [vmem:[%s3 + $0x14c] sm:$0xf]
  %v811 = vld [vmem:[%s3 + $0x150] sm:$0xf]
  %v812 = vld [vmem:[%s3 + $0x154] sm:$0xf]
  %v813 = vld [vmem:[%s3 + $0x158] sm:$0xf]
  %v814 = vld [vmem:[%s3 + $0x15c] sm:$0xf]
  %v815 = vld [vmem:[%s3 + $0x160] sm:$0xf]
  %v816 = vld [vmem:[%s3 + $0x164] sm:$0xf]
  %v817 = vld [vmem:[%s3 + $0x168] sm:$0xf]
  %v818 = vld [vmem:[%s3 + $0x16c] sm:$0xf]
  %v819 = vld [vmem:[%s3 + $0x170] sm:$0xf]
  %v820 = vld [vmem:[%s3 + $0x174] sm:$0xf]
  %v821 = vld [vmem:[%s3 + $0x178] sm:$0xf]
  %v822 = vld [vmem:[%s3 + $0x17c] sm:$0xf]
  %v823 = vld [vmem:[%s3 + $0x180] sm:$0xf]
  %v824 = vld [vmem:[%s3 + $0x184] sm:$0xf]
  %v825 = vld [vmem:[%s3 + $0x188] sm:$0xf]
  %v826 = vld [vmem:[%s3 + $0x18c] sm:$0xf]
  %v827 = vld [vmem:[%s3 + $0x190] sm:$0xf]
  %v828 = vld [vmem:[%s3 + $0x194] sm:$0xf]
  %v829 = vld [vmem:[%s3 + $0x198] sm:$0xf]
  %v830 = vld [vmem:[%s3 + $0x19c] sm:$0xf]
  %v831 = vld [vmem:[%s3 + $0x1a0] sm:$0xf]
  %v832 = vld [vmem:[%s3 + $0x1a4] sm:$0xf]
  %v833 = vld [vmem:[%s3 + $0x1a8] sm:$0xf]
  %v834 = vld [vmem:[%s3 + $0x1ac] sm:$0xf]
  %v835 = vld [vmem:[%s3 + $0x1b0] sm:$0xf]
  %v836 = vld [vmem:[%s3 + $0x1b4] sm:$0xf]
  %v837 = vld [vmem:[%s3 + $0x1b8] sm:$0xf]
  %v838 = vld [vmem:[%s3 + $0x1bc] sm:$0xf]
  %v839 = vld [vmem:[%s3 + $0x1c0] sm:$0xf]
  %v840 = vld [vmem:[%s3 + $0x1c4] sm:$0xf]
  %v841 = vld [vmem:[%s3 + $0x1c8] sm:$0xf]
  %v842 = vld [vmem:[%s3 + $0x1cc] sm:$0xf]
  %v843 = vld [vmem:[%s3 + $0x1d0] sm:$0xf]
  %v844 = vld [vmem:[%s3 + $0x1d4] sm:$0xf]
  %v845 = vld [vmem:[%s3 + $0x1d8] sm:$0xf]
  %v846 = vld [vmem:[%s3 + $0x1dc] sm:$0xf]
  %v847 = vld [vmem:[%s3 + $0x1e0] sm:$0xf]
  %v848 = vld [vmem:[%s3 + $0x1e4] sm:$0xf]
  %v849 = vld [vmem:[%s3 + $0x1e8] sm:$0xf]
  %v850 = vld [vmem:[%s3 + $0x1ec] sm:$0xf]
  %v851 = vld [vmem:[%s3 + $0x1f0] sm:$0xf]
  %v852 = vld [vmem:[%s3 + $0x1f4] sm:$0xf]
  %v853 = vld [vmem:[%s3 + $0x1f8] sm:$0xf]
  %v854 = vld [vmem:[%s3 + $0x1fc] sm:$0xf]
  %v855 = vld [vmem:[%s3 + $0x200] sm:$0xf]
  %v856 = vld [vmem:[%s3 + $0x204] sm:$0xf]
  %v857 = vld [vmem:[%s3 + $0x208] sm:$0xf]
  %v858 = vld [vmem:[%s3 + $0x20c] sm:$0xf]
  %v859 = vld [vmem:[%s3 + $0x210] sm:$0xf]
  %v860 = vld [vmem:[%s3 + $0x214] sm:$0xf]
  %v861 = vld [vmem:[%s3 + $0x218] sm:$0xf]
  %v862 = vld [vmem:[%s3 + $0x21c] sm:$0xf]
  %v863 = vld [vmem:[%s3 + $0x220] sm:$0xf]
  %v864 = vld [vmem:[%s3 + $0x224] sm:$0xf]
  %v865 = vld [vmem:[%s3 + $0x228] sm:$0xf]
  %v866 = vld [vmem:[%s3 + $0x22c] sm:$0xf]
  %v867 = vld [vmem:[%s3 + $0x230] sm:$0xf]
  %v868 = vld [vmem:[%s3 + $0x234] sm:$0xf]
  %v869 = vld [vmem:[%s3 + $0x238] sm:$0xf]
  %v870 = vld [vmem:[%s3 + $0x23c] sm:$0xf]
  %v871 = vlaneseq
  %v872 = vshrl.u32 %v871, 7
  %v873 = vsub.s32 2, %v872
  %v874 = vrot.slane %v30, %v873
  %v875 = vpack.c.b16 %v699, %v698
  %v876 = vpack.c.b16 %v714, %v713
  %v877 = vpack.c.b16 %v700, %v699
  %v878 = vpack.c.b16 %v715, %v714
  %v879 = vpack.c.b16 %v701, %v700
  %v880 = vpack.c.b16 %v716, %v715
  %v881 = vpack.c.b16 %v702, %v701
  %v882 = vpack.c.b16 %v717, %v716
  %v883 = vpack.c.b16 %v703, %v702
  %v884 = vpack.c.b16 %v718, %v717
  %v885 = vpack.c.b16 %v704, %v703
  %v886 = vpack.c.b16 %v719, %v718
  %v887 = vpack.c.b16 %v705, %v704
  %v888 = vpack.c.b16 %v720, %v719
  %v889 = vpack.c.b16 %v706, %v705
  %v890 = vpack.c.b16 %v721, %v720
  %v891 = vpack.c.b16 %v707, %v706
  %v892 = vpack.c.b16 %v722, %v721
  %v893 = vpack.c.b16 %v708, %v707
  %v894 = vpack.c.b16 %v723, %v722
  %v895 = vpack.c.b16 %v709, %v708
  %v896 = vpack.c.b16 %v724, %v723
  %v897 = vpack.c.b16 %v710, %v709
  %v898 = vpack.c.b16 %v725, %v724
  %v899 = vpack.c.b16 %v711, %v710
  %v900 = vpack.c.b16 %v708, %v708
  %v901 = vpack.c.b16 %v723, %v723
  %v902 = vpack.c.b16 %v709, %v709
  %v903 = vpack.c.b16 %v724, %v724
  %v904 = vpack.c.b16 %v710, %v710
  %v905 = vpack.c.b16 %v725, %v725
  %v906 = vpack.c.b16 %v711, %v711
  %v907 = vpack.c.b16 %v726, %v726
  %v908 = vpack.c.b16 %v712, %v712
  %v1087 = vunpack.c.l.b16 %v727
  %v1088 = vunpack.c.l.b16 %v728
  %v1089 = vunpack.c.l.b16 %v729
  %v1090 = vunpack.c.l.b16 %v730
  %v1091 = vunpack.c.l.b16 %v731
  %v1092 = vunpack.c.l.b16 %v732
  %v1093 = vunpack.c.l.b16 %v733
  %v1094 = vunpack.c.l.b16 %v734
  %v1095 = vunpack.c.l.b16 %v735
  %v1096 = vunpack.c.l.b16 %v736
  %v1097 = vunpack.c.l.b16 %v737
  %v1098 = vunpack.c.l.b16 %v738
  %v1099 = vunpack.c.l.b16 %v739
  %v1100 = vunpack.c.l.b16 %v740
  %v1101 = vunpack.c.l.b16 %v741
  %v1102 = vunpack.c.l.b16 %v742
  %v1103 = vunpack.c.l.b16 %v743
  %v1104 = vunpack.c.l.b16 %v744
  %v1105 = vunpack.c.l.b16 %v745
  %v1106 = vunpack.c.l.b16 %v746
  %v1107 = vunpack.c.l.b16 %v747
  %v1108 = vunpack.c.l.b16 %v748
  %v1109 = vunpack.c.l.b16 %v749
  %v1110 = vunpack.c.l.b16 %v750
  %v1111 = vunpack.c.l.b16 %v751
  %v1112 = vunpack.c.l.b16 %v752
  %v1113 = vunpack.c.l.b16 %v753
  %v1114 = vunpack.c.l.b16 %v754
  %v1115 = vunpack.c.l.b16 %v755
  %v1116 = vunpack.c.l.b16 %v756
  %v1117 = vunpack.c.l.b16 %v757
  %v1118 = vunpack.c.l.b16 %v758
  %v1119 = vunpack.c.l.b16 %v759
  %v1120 = vunpack.c.l.b16 %v760
  %v1121 = vunpack.c.l.b16 %v761
  %v1122 = vunpack.c.l.b16 %v762
  %v1123 = vunpack.c.l.b16 %v763
  %v1124 = vunpack.c.l.b16 %v764
  %v1125 = vunpack.c.l.b16 %v765
  %v1126 = vunpack.c.l.b16 %v766
  %v1127 = vunpack.c.l.b16 %v767
  %v1128 = vunpack.c.l.b16 %v768
  %v1129 = vunpack.c.l.b16 %v769
  %v1130 = vunpack.c.l.b16 %v770
  %v1131 = vunpack.c.l.b16 %v771
  %v1132 = vunpack.c.l.b16 %v772
  %v1133 = vunpack.c.l.b16 %v773
  %v1134 = vunpack.c.l.b16 %v774
  %v1135 = vunpack.c.l.b16 %v775
  %v1136 = vunpack.c.l.b16 %v776
  %v1137 = vunpack.c.l.b16 %v777
  %v1138 = vunpack.c.l.b16 %v778
  %v1139 = vunpack.c.l.b16 %v779
  %v1140 = vunpack.c.l.b16 %v780
  %v1141 = vunpack.c.l.b16 %v781
  %v1142 = vunpack.c.l.b16 %v782
  %v1143 = vunpack.c.l.b16 %v783
  %v1144 = vunpack.c.l.b16 %v784
  %v1145 = vunpack.c.l.b16 %v785
  %v1146 = vunpack.c.l.b16 %v786
  %v1147 = vunpack.c.l.b16 %v787
  %v1148 = vunpack.c.l.b16 %v788
  %v1149 = vunpack.c.l.b16 %v789
  %v1150 = vunpack.c.l.b16 %v790
  %v1151 = vunpack.c.l.b16 %v791
  %v1152 = vunpack.c.l.b16 %v792
  %v1153 = vunpack.c.l.b16 %v793
  %v1154 = vunpack.c.l.b16 %v794
  %v1155 = vunpack.c.l.b16 %v795
  %v1156 = vunpack.c.l.b16 %v796
  %v1157 = vunpack.c.l.b16 %v797
  %v1158 = vunpack.c.l.b16 %v798
  %v1159 = vunpack.c.l.b16 %v799
  %v1160 = vunpack.c.l.b16 %v800
  %v1161 = vunpack.c.l.b16 %v801
  %v1162 = vunpack.c.l.b16 %v802
  %v1163 = vunpack.c.l.b16 %v803
  %v1164 = vunpack.c.l.b16 %v804
  %v1165 = vunpack.c.l.b16 %v805
  %v1166 = vunpack.c.l.b16 %v806
  %v1167 = vunpack.c.l.b16 %v807
  %v1168 = vunpack.c.l.b16 %v808
  %v1169 = vunpack.c.l.b16 %v809
  %v1170 = vunpack.c.l.b16 %v810
  %v1171 = vunpack.c.l.b16 %v811
  %v1172 = vunpack.c.l.b16 %v812
  %v1173 = vunpack.c.l.b16 %v813
  %v1174 = vunpack.c.l.b16 %v814
  %v1175 = vunpack.c.l.b16 %v815
  %v1176 = vunpack.c.l.b16 %v816
  %v1177 = vunpack.c.l.b16 %v817
  %v1178 = vunpack.c.l.b16 %v818
  %v1179 = vunpack.c.l.b16 %v819
  %v1180 = vunpack.c.l.b16 %v820
  %v1181 = vunpack.c.l.b16 %v821
  %v1182 = vunpack.c.l.b16 %v822
  %v1183 = vunpack.c.l.b16 %v823
  %v1184 = vunpack.c.l.b16 %v824
  %v1185 = vunpack.c.l.b16 %v825
  %v1186 = vunpack.c.l.b16 %v826
  %v1187 = vunpack.c.l.b16 %v827
  %v1188 = vunpack.c.l.b16 %v828
  %v1189 = vunpack.c.l.b16 %v829
  %v1190 = vunpack.c.l.b16 %v830
  %v1191 = vunpack.c.l.b16 %v831
  %v1192 = vunpack.c.l.b16 %v832
  %v1193 = vunpack.c.l.b16 %v833
  %v1194 = vunpack.c.l.b16 %v834
  %v1195 = vunpack.c.l.b16 %v835
  %v1196 = vunpack.c.l.b16 %v836
  %v1197 = vunpack.c.l.b16 %v837
  %v1198 = vunpack.c.l.b16 %v838
  %v1199 = vunpack.c.l.b16 %v839
  %v1200 = vunpack.c.l.b16 %v840
  %v1201 = vunpack.c.l.b16 %v841
  %v1202 = vunpack.c.l.b16 %v842
  %v1203 = vunpack.c.l.b16 %v843
  %v1204 = vunpack.c.l.b16 %v844
  %v1205 = vunpack.c.l.b16 %v845
  %v1206 = vunpack.c.l.b16 %v846
  %v1207 = vunpack.c.l.b16 %v847
  %v1208 = vunpack.c.l.b16 %v848
  %v1209 = vunpack.c.l.b16 %v849
  %v1210 = vunpack.c.l.b16 %v850
  %v1211 = vunpack.c.l.b16 %v851
  %v1212 = vunpack.c.l.b16 %v852
  %v1213 = vunpack.c.l.b16 %v853
  %v1214 = vunpack.c.l.b16 %v854
  %v1215 = vunpack.c.l.b16 %v855
  %v1216 = vunpack.c.l.b16 %v856
  %v1217 = vunpack.c.l.b16 %v857
  %v1218 = vunpack.c.l.b16 %v858
  %v1219 = vunpack.c.l.b16 %v859
  %v1220 = vunpack.c.l.b16 %v860
  %v1221 = vunpack.c.l.b16 %v861
  %v1222 = vunpack.c.l.b16 %v862
  %v1223 = vunpack.c.l.b16 %v863
  %v1224 = vunpack.c.l.b16 %v864
  %v1225 = vunpack.c.l.b16 %v865
  %v1226 = vunpack.c.l.b16 %v866
  %v1227 = vunpack.c.l.b16 %v867
  %v1228 = vunpack.c.l.b16 %v868
  %v1229 = vunpack.c.l.b16 %v869
  %v1230 = vunpack.c.l.b16 %v870
  %v1231 = vpack.c.b16 %v1088, %v1087
  %v1232 = vpack.c.b16 %v1090, %v1089
  %v1233 = vpack.c.b16 %v1092, %v1091
  %v1234 = vpack.c.b16 %v1094, %v1093
  %v1235 = vpack.c.b16 %v1096, %v1095
  %v1236 = vpack.c.b16 %v1098, %v1097
  %v1237 = vpack.c.b16 %v1100, %v1099
  %v1238 = vpack.c.b16 %v1102, %v1101
  %v1239 = vpack.c.b16 %v1104, %v1103
  %v1240 = vpack.c.b16 %v1106, %v1105
  %v1241 = vpack.c.b16 %v1108, %v1107
  %v1242 = vpack.c.b16 %v1110, %v1109
  %v1243 = vpack.c.b16 %v1112, %v1111
  %v1244 = vpack.c.b16 %v1114, %v1113
  %v1245 = vpack.c.b16 %v1116, %v1115
  %v1246 = vpack.c.b16 %v1118, %v1117
  %v1247 = vpack.c.b16 %v1120, %v1119
  %v1248 = vpack.c.b16 %v1122, %v1121
  %v1249 = vpack.c.b16 %v1124, %v1123
  %v1250 = vpack.c.b16 %v1126, %v1125
  %v1251 = vpack.c.b16 %v1128, %v1127
  %v1252 = vpack.c.b16 %v1130, %v1129
  %v1253 = vpack.c.b16 %v1132, %v1131
  %v1254 = vpack.c.b16 %v1134, %v1133
  %v1255 = vpack.c.b16 %v1136, %v1135
  %v1256 = vpack.c.b16 %v1138, %v1137
  %v1257 = vpack.c.b16 %v1140, %v1139
  %v1258 = vpack.c.b16 %v1142, %v1141
  %v1259 = vpack.c.b16 %v1144, %v1143
  %v1260 = vpack.c.b16 %v1146, %v1145
  %v1261 = vpack.c.b16 %v1148, %v1147
  %v1262 = vpack.c.b16 %v1150, %v1149
  %v1263 = vpack.c.b16 %v1152, %v1151
  %v1264 = vpack.c.b16 %v1154, %v1153
  %v1265 = vpack.c.b16 %v1156, %v1155
  %v1266 = vpack.c.b16 %v1158, %v1157
  %v1267 = vpack.c.b16 %v1160, %v1159
  %v1268 = vpack.c.b16 %v1162, %v1161
  %v1269 = vpack.c.b16 %v1164, %v1163
  %v1270 = vpack.c.b16 %v1166, %v1165
  %v1271 = vpack.c.b16 %v1168, %v1167
  %v1272 = vpack.c.b16 %v1170, %v1169
  %v1273 = vpack.c.b16 %v1172, %v1171
  %v1274 = vpack.c.b16 %v1174, %v1173
  %v1275 = vpack.c.b16 %v1176, %v1175
  %v1276 = vpack.c.b16 %v1178, %v1177
  %v1277 = vpack.c.b16 %v1180, %v1179
  %v1278 = vpack.c.b16 %v1182, %v1181
  %v1279 = vpack.c.b16 %v1184, %v1183
  %v1280 = vpack.c.b16 %v1186, %v1185
  %v1281 = vpack.c.b16 %v1188, %v1187
  %v1282 = vpack.c.b16 %v1190, %v1189
  %v1283 = vpack.c.b16 %v1192, %v1191
  %v1284 = vpack.c.b16 %v1194, %v1193
  %v1285 = vpack.c.b16 %v1196, %v1195
  %v1286 = vpack.c.b16 %v1198, %v1197
  %v1287 = vpack.c.b16 %v1200, %v1199
  %v1288 = vpack.c.b16 %v1202, %v1201
  %v1289 = vpack.c.b16 %v1204, %v1203
  %v1290 = vpack.c.b16 %v1206, %v1205
  %v1291 = vpack.c.b16 %v1208, %v1207
  %v1292 = vpack.c.b16 %v1210, %v1209
  %v1293 = vpack.c.b16 %v1212, %v1211
  %v1294 = vpack.c.b16 %v1214, %v1213
  %v1295 = vpack.c.b16 %v1216, %v1215
  %v1296 = vpack.c.b16 %v1218, %v1217
  %v1297 = vpack.c.b16 %v1220, %v1219
  %v1298 = vpack.c.b16 %v1222, %v1221
  %v1299 = vpack.c.b16 %v1224, %v1223
  %v1300 = vpack.c.b16 %v1226, %v1225
  %v1301 = vpack.c.b16 %v1228, %v1227
  %v1302 = vpack.c.b16 %v1230, %v1229
  %1375 = vmatprep.subr.bf16.mxu0 0
  %1376 = vmatpush1.bf16.msra.mxu0 %v1238
  %1377 = vmatprep.subr.bf16.mxu0 0
  %1378 = vmatpush1.bf16.msra.mxu0 %v1237
  %1379 = vmatprep.subr.bf16.mxu0 0
  %1380 = vmatpush1.bf16.msra.mxu0 %v1236
  %1381 = vmatprep.subr.bf16.mxu0 0
  %1382 = vmatpush1.bf16.msra.mxu0 %v1235
  %1383 = vmatprep.subr.bf16.mxu0 0
  %1384 = vmatpush1.bf16.msra.mxu0 %v1234
  %1385 = vmatprep.subr.bf16.mxu0 0
  %1386 = vmatpush1.bf16.msra.mxu0 %v1233
  %1387 = vmatprep.subr.bf16.mxu0 0
  %1388 = vmatpush1.bf16.msra.mxu0 %v1232
  %1389 = vmatprep.subr.bf16.mxu0 0
  %1390 = vmatpush1.bf16.msra.mxu0 %v1231
  %1391 = vmatprep.subr.bf16.mxu0 0
  %1392 = vmatpush2.bf16.msra.mxu0 %v1246
  %1393 = vmatprep.subr.bf16.mxu0 0
  %1394 = vmatpush2.bf16.msra.mxu0 %v1245
  %1395 = vmatprep.subr.bf16.mxu0 0
  %1396 = vmatpush2.bf16.msra.mxu0 %v1244
  %1397 = vmatprep.subr.bf16.mxu0 0
  %1398 = vmatpush2.bf16.msra.mxu0 %v1243
  %1399 = vmatprep.subr.bf16.mxu0 0
  %1400 = vmatpush2.bf16.msra.mxu0 %v1242
  %1401 = vmatprep.subr.bf16.mxu0 0
  %1402 = vmatpush2.bf16.msra.mxu0 %v1241
  %1403 = vmatprep.subr.bf16.mxu0 0
  %1404 = vmatpush2.bf16.msra.mxu0 %v1240
  %1405 = vmatprep.subr.bf16.mxu0 0
  %1406 = vmatpush2.bf16.msra.mxu0 %v1239
  %1407 = vmatprep.mubr.bf16.mxu0 %v876
  %1408 = vmatmul.mubr.bf16.gmra.mxu0 %v875
  %v1409 = vpop.f32.mrf.mxu0
  %v1410 = vadd.f32 %v874, %v1409
  %v1411 = vpop.f32.mrf.mxu0
  %v1412 = vpop.f32.mrf.mxu0
  %v1413 = vadd.f32 %v874, %v1412
  %v1414 = vpop.f32.mrf.mxu0
  %1415 = vmatprep.mubr.bf16.mxu0 %v880
  %1416 = vmatmul.mubr.bf16.gmra.mxu0 %v879
  %v1417 = vpop.f32.mrf.mxu0
  %v1418 = vadd.f32 %v874, %v1417
  %v1419 = vpop.f32.mrf.mxu0
  %v1420 = vpop.f32.mrf.mxu0
  %v1421 = vadd.f32 %v874, %v1420
  %v1422 = vpop.f32.mrf.mxu0
  %1423 = vmatprep.mubr.bf16.mxu0 %v884
  %1424 = vmatmul.mubr.bf16.gmra.mxu0 %v883
  %v1425 = vpop.f32.mrf.mxu0
  %v1426 = vadd.f32 %v874, %v1425
  %v1427 = vpop.f32.mrf.mxu0
  %v1428 = vpop.f32.mrf.mxu0
  %v1429 = vadd.f32 %v874, %v1428
  %v1430 = vpop.f32.mrf.mxu0
  %1431 = vmatprep.mubr.bf16.mxu0 %v888
  %1432 = vmatmul.mubr.bf16.gmra.mxu0 %v887
  %v1433 = vpop.f32.mrf.mxu0
  %v1434 = vadd.f32 %v874, %v1433
  %v1435 = vpop.f32.mrf.mxu0
  %v1436 = vpop.f32.mrf.mxu0
  %v1437 = vadd.f32 %v874, %v1436
  %v1438 = vpop.f32.mrf.mxu0
  %1439 = vmatprep.mubr.bf16.mxu0 %v892
  %1440 = vmatmul.mubr.bf16.gmra.mxu0 %v891
  %v1441 = vpop.f32.mrf.mxu0
  %v1442 = vadd.f32 %v874, %v1441
  %v1443 = vpop.f32.mrf.mxu0
  %v1444 = vpop.f32.mrf.mxu0
  %v1445 = vadd.f32 %v874, %v1444
  %v1446 = vpop.f32.mrf.mxu0
  %1447 = vmatprep.mubr.bf16.mxu0 %v901
  %1448 = vmatmul.mubr.bf16.gmra.mxu0 %v900
  %v1449 = vpop.f32.mrf.mxu0
  %v1450 = vadd.f32 %v874, %v1449
  %v1451 = vpop.f32.mrf.mxu0
  %v1452 = vpop.f32.mrf.mxu0
  %v1453 = vpop.f32.mrf.mxu0
  %1454 = vdwg.mxu0
  %1455 = vmatprep.subr.bf16.mxu0 0
  %1456 = vmatpush1.bf16.msra.mxu0 %v1254
  %1457 = vmatprep.subr.bf16.mxu0 0
  %1458 = vmatpush1.bf16.msra.mxu0 %v1253
  %1459 = vmatprep.subr.bf16.mxu0 0
  %1460 = vmatpush1.bf16.msra.mxu0 %v1252
  %1461 = vmatprep.subr.bf16.mxu0 0
  %1462 = vmatpush1.bf16.msra.mxu0 %v1251
  %1463 = vmatprep.subr.bf16.mxu0 0
  %1464 = vmatpush1.bf16.msra.mxu0 %v1250
  %1465 = vmatprep.subr.bf16.mxu0 0
  %1466 = vmatpush1.bf16.msra.mxu0 %v1249
  %1467 = vmatprep.subr.bf16.mxu0 0
  %1468 = vmatpush1.bf16.msra.mxu0 %v1248
  %1469 = vmatprep.subr.bf16.mxu0 0
  %1470 = vmatpush1.bf16.msra.mxu0 %v1247
  %1471 = vmatprep.subr.bf16.mxu0 0
  %1472 = vmatpush2.bf16.msra.mxu0 %v1262
  %1473 = vmatprep.subr.bf16.mxu0 0
  %1474 = vmatpush2.bf16.msra.mxu0 %v1261
  %1475 = vmatprep.subr.bf16.mxu0 0
  %1476 = vmatpush2.bf16.msra.mxu0 %v1260
  %1477 = vmatprep.subr.bf16.mxu0 0
  %1478 = vmatpush2.bf16.msra.mxu0 %v1259
  %1479 = vmatprep.subr.bf16.mxu0 0
  %1480 = vmatpush2.bf16.msra.mxu0 %v1258
  %1481 = vmatprep.subr.bf16.mxu0 0
  %1482 = vmatpush2.bf16.msra.mxu0 %v1257
  %1483 = vmatprep.subr.bf16.mxu0 0
  %1484 = vmatpush2.bf16.msra.mxu0 %v1256
  %1485 = vmatprep.subr.bf16.mxu0 0
  %1486 = vmatpush2.bf16.msra.mxu0 %v1255
  %1487 = vmatprep.mubr.bf16.mxu0 %v878
  %1488 = vmatmul.mubr.bf16.gmra.mxu0 %v877
  %v1489 = vpop.f32.mrf.mxu0
  %v1490 = vadd.f32 %v1410, %v1489
  %v1491 = vpop.f32.mrf.mxu0
  %v1492 = vpop.f32.mrf.mxu0
  %v1493 = vadd.f32 %v1413, %v1492
  %v1494 = vpop.f32.mrf.mxu0
  %1495 = vmatprep.mubr.bf16.mxu0 %v882
  %1496 = vmatmul.mubr.bf16.gmra.mxu0 %v881
  %v1497 = vpop.f32.mrf.mxu0
  %v1498 = vadd.f32 %v1418, %v1497
  %v1499 = vpop.f32.mrf.mxu0
  %v1500 = vpop.f32.mrf.mxu0
  %v1501 = vadd.f32 %v1421, %v1500
  %v1502 = vpop.f32.mrf.mxu0
  %1503 = vmatprep.mubr.bf16.mxu0 %v886
  %1504 = vmatmul.mubr.bf16.gmra.mxu0 %v885
  %v1505 = vpop.f32.mrf.mxu0
  %v1506 = vadd.f32 %v1426, %v1505
  %v1507 = vpop.f32.mrf.mxu0
  %v1508 = vpop.f32.mrf.mxu0
  %v1509 = vadd.f32 %v1429, %v1508
  %v1510 = vpop.f32.mrf.mxu0
  %1511 = vmatprep.mubr.bf16.mxu0 %v890
  %1512 = vmatmul.mubr.bf16.gmra.mxu0 %v889
  %v1513 = vpop.f32.mrf.mxu0
  %v1514 = vadd.f32 %v1434, %v1513
  %v1515 = vpop.f32.mrf.mxu0
  %v1516 = vpop.f32.mrf.mxu0
  %v1517 = vadd.f32 %v1437, %v1516
  %v1518 = vpop.f32.mrf.mxu0
  %1519 = vmatprep.mubr.bf16.mxu0 %v894
  %1520 = vmatmul.mubr.bf16.gmra.mxu0 %v893
  %v1521 = vpop.f32.mrf.mxu0
  %v1522 = vadd.f32 %v1442, %v1521
  %v1523 = vpop.f32.mrf.mxu0
  %v1524 = vpop.f32.mrf.mxu0
  %v1525 = vadd.f32 %v1445, %v1524
  %v1526 = vpop.f32.mrf.mxu0
  %1527 = vmatprep.mubr.bf16.mxu0 %v903
  %1528 = vmatmul.mubr.bf16.gmra.mxu0 %v902
  %v1529 = vpop.f32.mrf.mxu0
  %v1530 = vadd.f32 %v1450, %v1529
  %v1531 = vpop.f32.mrf.mxu0
  %v1532 = vpop.f32.mrf.mxu0
  %v1533 = vpop.f32.mrf.mxu0
  %1534 = vdwg.mxu0
  %1535 = vmatprep.subr.bf16.mxu0 0
  %1536 = vmatpush1.bf16.msra.mxu0 %v1270
  %1537 = vmatprep.subr.bf16.mxu0 0
  %1538 = vmatpush1.bf16.msra.mxu0 %v1269
  %1539 = vmatprep.subr.bf16.mxu0 0
  %1540 = vmatpush1.bf16.msra.mxu0 %v1268
  %1541 = vmatprep.subr.bf16.mxu0 0
  %1542 = vmatpush1.bf16.msra.mxu0 %v1267
  %1543 = vmatprep.subr.bf16.mxu0 0
  %1544 = vmatpush1.bf16.msra.mxu0 %v1266
  %1545 = vmatprep.subr.bf16.mxu0 0
  %1546 = vmatpush1.bf16.msra.mxu0 %v1265
  %1547 = vmatprep.subr.bf16.mxu0 0
  %1548 = vmatpush1.bf16.msra.mxu0 %v1264
  %1549 = vmatprep.subr.bf16.mxu0 0
  %1550 = vmatpush1.bf16.msra.mxu0 %v1263
  %1551 = vmatprep.subr.bf16.mxu0 0
  %1552 = vmatpush2.bf16.msra.mxu0 %v1278
  %1553 = vmatprep.subr.bf16.mxu0 0
  %1554 = vmatpush2.bf16.msra.mxu0 %v1277
  %1555 = vmatprep.subr.bf16.mxu0 0
  %1556 = vmatpush2.bf16.msra.mxu0 %v1276
  %1557 = vmatprep.subr.bf16.mxu0 0
  %1558 = vmatpush2.bf16.msra.mxu0 %v1275
  %1559 = vmatprep.subr.bf16.mxu0 0
  %1560 = vmatpush2.bf16.msra.mxu0 %v1274
  %1561 = vmatprep.subr.bf16.mxu0 0
  %1562 = vmatpush2.bf16.msra.mxu0 %v1273
  %1563 = vmatprep.subr.bf16.mxu0 0
  %1564 = vmatpush2.bf16.msra.mxu0 %v1272
  %1565 = vmatprep.subr.bf16.mxu0 0
  %1566 = vmatpush2.bf16.msra.mxu0 %v1271
  %1567 = vmatprep.mubr.bf16.mxu0 %v880
  %1568 = vmatmul.mubr.bf16.gmra.mxu0 %v879
  %v1569 = vpop.f32.mrf.mxu0
  %v1570 = vadd.f32 %v1490, %v1569
  %v1571 = vpop.f32.mrf.mxu0
  %v1572 = vpop.f32.mrf.mxu0
  %v1573 = vadd.f32 %v1493, %v1572
  %v1574 = vpop.f32.mrf.mxu0
  %1575 = vmatprep.mubr.bf16.mxu0 %v884
  %1576 = vmatmul.mubr.bf16.gmra.mxu0 %v883
  %v1577 = vpop.f32.mrf.mxu0
  %v1578 = vadd.f32 %v1498, %v1577
  %v1579 = vpop.f32.mrf.mxu0
  %v1580 = vpop.f32.mrf.mxu0
  %v1581 = vadd.f32 %v1501, %v1580
  %v1582 = vpop.f32.mrf.mxu0
  %1583 = vmatprep.mubr.bf16.mxu0 %v888
  %1584 = vmatmul.mubr.bf16.gmra.mxu0 %v887
  %v1585 = vpop.f32.mrf.mxu0
  %v1586 = vadd.f32 %v1506, %v1585
  %v1587 = vpop.f32.mrf.mxu0
  %v1588 = vpop.f32.mrf.mxu0
  %v1589 = vadd.f32 %v1509, %v1588
  %v1590 = vpop.f32.mrf.mxu0
  %1591 = vmatprep.mubr.bf16.mxu0 %v892
  %1592 = vmatmul.mubr.bf16.gmra.mxu0 %v891
  %v1593 = vpop.f32.mrf.mxu0
  %v1594 = vadd.f32 %v1514, %v1593
  %v1595 = vpop.f32.mrf.mxu0
  %v1596 = vpop.f32.mrf.mxu0
  %v1597 = vadd.f32 %v1517, %v1596
  %v1598 = vpop.f32.mrf.mxu0
  %1599 = vmatprep.mubr.bf16.mxu0 %v896
  %1600 = vmatmul.mubr.bf16.gmra.mxu0 %v895
  %v1601 = vpop.f32.mrf.mxu0
  %v1602 = vadd.f32 %v1522, %v1601
  %v1603 = vpop.f32.mrf.mxu0
  %v1604 = vpop.f32.mrf.mxu0
  %v1605 = vadd.f32 %v1525, %v1604
  %v1606 = vpop.f32.mrf.mxu0
  %1607 = vmatprep.mubr.bf16.mxu0 %v905
  %1608 = vmatmul.mubr.bf16.gmra.mxu0 %v904
  %v1609 = vpop.f32.mrf.mxu0
  %v1610 = vadd.f32 %v1530, %v1609
  %v1611 = vpop.f32.mrf.mxu0
  %v1612 = vpop.f32.mrf.mxu0
  %v1613 = vpop.f32.mrf.mxu0
  %1614 = vdwg.mxu0
  %1615 = vmatprep.subr.bf16.mxu0 0
  %1616 = vmatpush1.bf16.msra.mxu0 %v1286
  %1617 = vmatprep.subr.bf16.mxu0 0
  %1618 = vmatpush1.bf16.msra.mxu0 %v1285
  %1619 = vmatprep.subr.bf16.mxu0 0
  %1620 = vmatpush1.bf16.msra.mxu0 %v1284
  %1621 = vmatprep.subr.bf16.mxu0 0
  %1622 = vmatpush1.bf16.msra.mxu0 %v1283
  %1623 = vmatprep.subr.bf16.mxu0 0
  %1624 = vmatpush1.bf16.msra.mxu0 %v1282
  %1625 = vmatprep.subr.bf16.mxu0 0
  %1626 = vmatpush1.bf16.msra.mxu0 %v1281
  %1627 = vmatprep.subr.bf16.mxu0 0
  %1628 = vmatpush1.bf16.msra.mxu0 %v1280
  %1629 = vmatprep.subr.bf16.mxu0 0
  %1630 = vmatpush1.bf16.msra.mxu0 %v1279
  %1631 = vmatprep.subr.bf16.mxu0 0
  %1632 = vmatpush2.bf16.msra.mxu0 %v1294
  %1633 = vmatprep.subr.bf16.mxu0 0
  %1634 = vmatpush2.bf16.msra.mxu0 %v1293
  %1635 = vmatprep.subr.bf16.mxu0 0
  %1636 = vmatpush2.bf16.msra.mxu0 %v1292
  %1637 = vmatprep.subr.bf16.mxu0 0
  %1638 = vmatpush2.bf16.msra.mxu0 %v1291
  %1639 = vmatprep.subr.bf16.mxu0 0
  %1640 = vmatpush2.bf16.msra.mxu0 %v1290
  %1641 = vmatprep.subr.bf16.mxu0 0
  %1642 = vmatpush2.bf16.msra.mxu0 %v1289
  %1643 = vmatprep.subr.bf16.mxu0 0
  %1644 = vmatpush2.bf16.msra.mxu0 %v1288
  %1645 = vmatprep.subr.bf16.mxu0 0
  %1646 = vmatpush2.bf16.msra.mxu0 %v1287
  %1647 = vmatprep.mubr.bf16.mxu0 %v882
  %1648 = vmatmul.mubr.bf16.gmra.mxu0 %v881
  %v1649 = vpop.f32.mrf.mxu0
  %v1650 = vadd.f32 %v1570, %v1649
  %v1651 = vpop.f32.mrf.mxu0
  %v1652 = vpop.f32.mrf.mxu0
  %v1653 = vadd.f32 %v1573, %v1652
  %v1654 = vpop.f32.mrf.mxu0
  %1655 = vmatprep.mubr.bf16.mxu0 %v886
  %1656 = vmatmul.mubr.bf16.gmra.mxu0 %v885
  %v1657 = vpop.f32.mrf.mxu0
  %v1658 = vadd.f32 %v1578, %v1657
  %v1659 = vpop.f32.mrf.mxu0
  %v1660 = vpop.f32.mrf.mxu0
  %v1661 = vadd.f32 %v1581, %v1660
  %v1662 = vpop.f32.mrf.mxu0
  %1663 = vmatprep.mubr.bf16.mxu0 %v890
  %1664 = vmatmul.mubr.bf16.gmra.mxu0 %v889
  %v1665 = vpop.f32.mrf.mxu0
  %v1666 = vadd.f32 %v1586, %v1665
  %v1667 = vpop.f32.mrf.mxu0
  %v1668 = vpop.f32.mrf.mxu0
  %v1669 = vadd.f32 %v1589, %v1668
  %v1670 = vpop.f32.mrf.mxu0
  %1671 = vmatprep.mubr.bf16.mxu0 %v894
  %1672 = vmatmul.mubr.bf16.gmra.mxu0 %v893
  %v1673 = vpop.f32.mrf.mxu0
  %v1674 = vadd.f32 %v1594, %v1673
  %v1675 = vpop.f32.mrf.mxu0
  %v1676 = vpop.f32.mrf.mxu0
  %v1677 = vadd.f32 %v1597, %v1676
  %v1678 = vpop.f32.mrf.mxu0
  %1679 = vmatprep.mubr.bf16.mxu0 %v898
  %1680 = vmatmul.mubr.bf16.gmra.mxu0 %v897
  %v1681 = vpop.f32.mrf.mxu0
  %v1682 = vadd.f32 %v1602, %v1681
  %v1683 = vpop.f32.mrf.mxu0
  %v1684 = vpop.f32.mrf.mxu0
  %v1685 = vadd.f32 %v1605, %v1684
  %v1686 = vpop.f32.mrf.mxu0
  %1687 = vmatprep.mubr.bf16.mxu0 %v907
  %1688 = vmatmul.mubr.bf16.gmra.mxu0 %v906
  %v1689 = vpop.f32.mrf.mxu0
  %v1690 = vadd.f32 %v1610, %v1689
  %v1691 = vpop.f32.mrf.mxu0
  %v1692 = vpop.f32.mrf.mxu0
  %v1693 = vpop.f32.mrf.mxu0
  %1694 = vdwg.mxu0
  %1695 = vmatprep.subr.bf16.mxu0 0
  %1696 = vmatpush1.bf16.msra.mxu0 %v1302
  %1697 = vmatprep.subr.bf16.mxu0 0
  %1698 = vmatpush1.bf16.msra.mxu0 %v1301
  %1699 = vmatprep.subr.bf16.mxu0 0
  %1700 = vmatpush1.bf16.msra.mxu0 %v1300
  %1701 = vmatprep.subr.bf16.mxu0 0
  %1702 = vmatpush1.bf16.msra.mxu0 %v1299
  %1703 = vmatprep.subr.bf16.mxu0 0
  %1704 = vmatpush1.bf16.msra.mxu0 %v1298
  %1705 = vmatprep.subr.bf16.mxu0 0
  %1706 = vmatpush1.bf16.msra.mxu0 %v1297
  %1707 = vmatprep.subr.bf16.mxu0 0
  %1708 = vmatpush1.bf16.msra.mxu0 %v1296
  %1709 = vmatprep.subr.bf16.mxu0 0
  %1710 = vmatpush1.bf16.msra.mxu0 %v1295
  %1711 = vmatprep.subr.bf16.mxu0 0
  %1712 = vmatpush2.bf16.msra.mxu0 0
  %1713 = vmatprep.subr.bf16.mxu0 0
  %1714 = vmatpush2.bf16.msra.mxu0 0
  %1715 = vmatprep.subr.bf16.mxu0 0
  %1716 = vmatpush2.bf16.msra.mxu0 0
  %1717 = vmatprep.subr.bf16.mxu0 0
  %1718 = vmatpush2.bf16.msra.mxu0 0
  %1719 = vmatprep.subr.bf16.mxu0 0
  %1720 = vmatpush2.bf16.msra.mxu0 0
  %1721 = vmatprep.subr.bf16.mxu0 0
  %1722 = vmatpush2.bf16.msra.mxu0 0
  %1723 = vmatprep.subr.bf16.mxu0 0
  %1724 = vmatpush2.bf16.msra.mxu0 0
  %1725 = vmatprep.subr.bf16.mxu0 0
  %1726 = vmatpush2.bf16.msra.mxu0 0
  %1727 = vmatprep.mubr.bf16.mxu0 0
  %1728 = vmatmul.mubr.bf16.gmra.mxu0 %v883
  %v1729 = vpop.f32.mrf.mxu0
  %v1730 = vadd.f32 %v1650, %v1729
  %v1731 = vpop.f32.mrf.mxu0
  %v1732 = vpop.f32.mrf.mxu0
  %v1733 = vadd.f32 %v1653, %v1732
  %v1734 = vpop.f32.mrf.mxu0
  %1735 = vmatprep.mubr.bf16.mxu0 0
  %1736 = vmatmul.mubr.bf16.gmra.mxu0 %v887
  %v1737 = vpop.f32.mrf.mxu0
  %v1738 = vadd.f32 %v1658, %v1737
  %v1739 = vpop.f32.mrf.mxu0
  %v1740 = vpop.f32.mrf.mxu0
  %v1741 = vadd.f32 %v1661, %v1740
  %v1742 = vpop.f32.mrf.mxu0
  %1743 = vmatprep.mubr.bf16.mxu0 0
  %1744 = vmatmul.mubr.bf16.gmra.mxu0 %v891
  %v1745 = vpop.f32.mrf.mxu0
  %v1746 = vadd.f32 %v1666, %v1745
  %v1747 = vpop.f32.mrf.mxu0
  %v1748 = vpop.f32.mrf.mxu0
  %v1749 = vadd.f32 %v1669, %v1748
  %v1750 = vpop.f32.mrf.mxu0
  %1751 = vmatprep.mubr.bf16.mxu0 0
  %1752 = vmatmul.mubr.bf16.gmra.mxu0 %v895
  %v1753 = vpop.f32.mrf.mxu0
  %v1754 = vadd.f32 %v1674, %v1753
  %v1755 = vpop.f32.mrf.mxu0
  %v1756 = vpop.f32.mrf.mxu0
  %v1757 = vadd.f32 %v1677, %v1756
  %v1758 = vpop.f32.mrf.mxu0
  %1759 = vmatprep.mubr.bf16.mxu0 0
  %1760 = vmatmul.mubr.bf16.gmra.mxu0 %v899
  %v1761 = vpop.f32.mrf.mxu0
  %v1762 = vadd.f32 %v1682, %v1761
  %v1763 = vpop.f32.mrf.mxu0
  %v1764 = vpop.f32.mrf.mxu0
  %v1765 = vadd.f32 %v1685, %v1764
  %v1766 = vpop.f32.mrf.mxu0
  %1767 = vmatprep.mubr.bf16.mxu0 0
  %1768 = vmatmul.mubr.bf16.gmra.mxu0 %v908
  %v1769 = vpop.f32.mrf.mxu0
  %v1770 = vadd.f32 %v1690, %v1769
  %v1771 = vpop.f32.mrf.mxu0
  %v1772 = vpop.f32.mrf.mxu0
  %v1773 = vpop.f32.mrf.mxu0
  %1774 = vdwg.mxu0
  %v1775 = vmax.f32 %v1730, 0.0
  %v1776 = vmax.f32 %v1733, 0.0
  %v1777 = vmax.f32 %v1738, 0.0
  %v1778 = vmax.f32 %v1741, 0.0
  %v1779 = vmax.f32 %v1746, 0.0
  %v1780 = vmax.f32 %v1749, 0.0
  %v1781 = vmax.f32 %v1754, 0.0
  %v1782 = vmax.f32 %v1757, 0.0
  %v1783 = vmax.f32 %v1762, 0.0
  %v1784 = vmax.f32 %v1765, 0.0
  %v1785 = vmax.f32 %v1770, 0.0
  %v1786 = vpack.c.bf16 %v1776, %v1775
  %v1787 = vpack.c.bf16 %v1778, %v1777
  %v1788 = vpack.c.bf16 %v1780, %v1779
  %v1789 = vpack.c.bf16 %v1782, %v1781
  %v1790 = vpack.c.bf16 %v1784, %v1783
  %v1791 = vpack.c.bf16 %v1785, %v1785
  %v1798 = vunpack.c.l.b16 %v1786
  %v1799 = vunpack.c.h.b16 %v1786
  %v1800 = vunpack.c.l.b16 %v1787
  %v1801 = vunpack.c.h.b16 %v1787
  %v1802 = vunpack.c.l.b16 %v1788
  %v1803 = vunpack.c.h.b16 %v1788
  %v1804 = vunpack.c.l.b16 %v1789
  %v1805 = vunpack.c.h.b16 %v1789
  %v1806 = vunpack.c.l.b16 %v1790
  %v1807 = vunpack.c.h.b16 %v1790
  %v1808 = vunpack.c.l.b16 %v1791
  %v1809 = vld [vmem:[%s4] sm:$0xf]
  %v1810 = vld [vmem:[%s4 + $0x4] sm:$0xf]
  %v1811 = vld [vmem:[%s4 + $0x8] sm:$0xf]
  %v1812 = vld [vmem:[%s4 + $0xc] sm:$0xf]
  %v1813 = vld [vmem:[%s4 + $0x10] sm:$0xf]
  %v1814 = vld [vmem:[%s4 + $0x14] sm:$0xf]
  %v1815 = vld [vmem:[%s4 + $0x18] sm:$0xf]
  %v1816 = vld [vmem:[%s4 + $0x1c] sm:$0xf]
  %v1817 = vld [vmem:[%s4 + $0x20] sm:$0xf]
  %v1818 = vld [vmem:[%s4 + $0x24] sm:$0xf]
  %v1819 = vld [vmem:[%s4 + $0x28] sm:$0xf]
  %v1820 = vld [vmem:[%s4 + $0x2c] sm:$0xf]
  %v1821 = vld [vmem:[%s4 + $0x30] sm:$0xf]
  %v1822 = vld [vmem:[%s4 + $0x34] sm:$0xf]
  %v1823 = vld [vmem:[%s4 + $0x38] sm:$0xf]
  %v1824 = vld [vmem:[%s4 + $0x3c] sm:$0xf]
  %v1825 = vld [vmem:[%s4 + $0x40] sm:$0xf]
  %v1826 = vld [vmem:[%s4 + $0x44] sm:$0xf]
  %v1827 = vld [vmem:[%s4 + $0x48] sm:$0xf]
  %v1828 = vld [vmem:[%s4 + $0x4c] sm:$0xf]
  %v1829 = vld [vmem:[%s4 + $0x50] sm:$0xf]
  %v1830 = vld [vmem:[%s4 + $0x54] sm:$0xf]
  %v1831 = vld [vmem:[%s4 + $0x58] sm:$0xf]
  %v1832 = vld [vmem:[%s4 + $0x5c] sm:$0xf]
  %v1833 = vld [vmem:[%s4 + $0x60] sm:$0xf]
  %v1834 = vld [vmem:[%s4 + $0x64] sm:$0xf]
  %v1835 = vld [vmem:[%s4 + $0x68] sm:$0xf]
  %v1836 = vld [vmem:[%s4 + $0x6c] sm:$0xf]
  %v1837 = vld [vmem:[%s4 + $0x70] sm:$0xf]
  %v1838 = vld [vmem:[%s4 + $0x74] sm:$0xf]
  %v1839 = vld [vmem:[%s4 + $0x78] sm:$0xf]
  %v1840 = vld [vmem:[%s4 + $0x7c] sm:$0xf]
  %v1841 = vld [vmem:[%s4 + $0x80] sm:$0xf]
  %v1842 = vld [vmem:[%s4 + $0x84] sm:$0xf]
  %v1843 = vld [vmem:[%s4 + $0x88] sm:$0xf]
  %v1844 = vld [vmem:[%s4 + $0x8c] sm:$0xf]
  %v1845 = vld [vmem:[%s4 + $0x90] sm:$0xf]
  %v1846 = vld [vmem:[%s4 + $0x94] sm:$0xf]
  %v1847 = vld [vmem:[%s4 + $0x98] sm:$0xf]
  %v1848 = vld [vmem:[%s4 + $0x9c] sm:$0xf]
  %v1849 = vld [vmem:[%s4 + $0xa0] sm:$0xf]
  %v1850 = vld [vmem:[%s4 + $0xa4] sm:$0xf]
  %v1851 = vld [vmem:[%s4 + $0xa8] sm:$0xf]
  %v1852 = vld [vmem:[%s4 + $0xac] sm:$0xf]
  %v1853 = vld [vmem:[%s4 + $0xb0] sm:$0xf]
  %v1854 = vld [vmem:[%s4 + $0xb4] sm:$0xf]
  %v1855 = vld [vmem:[%s4 + $0xb8] sm:$0xf]
  %v1856 = vld [vmem:[%s4 + $0xbc] sm:$0xf]
  %v1857 = vld [vmem:[%s4 + $0xc0] sm:$0xf]
  %v1858 = vld [vmem:[%s4 + $0xc4] sm:$0xf]
  %v1859 = vld [vmem:[%s4 + $0xc8] sm:$0xf]
  %v1860 = vld [vmem:[%s4 + $0xcc] sm:$0xf]
  %v1861 = vld [vmem:[%s4 + $0xd0] sm:$0xf]
  %v1862 = vld [vmem:[%s4 + $0xd4] sm:$0xf]
  %v1863 = vld [vmem:[%s4 + $0xd8] sm:$0xf]
  %v1864 = vld [vmem:[%s4 + $0xdc] sm:$0xf]
  %v1865 = vld [vmem:[%s4 + $0xe0] sm:$0xf]
  %v1866 = vld [vmem:[%s4 + $0xe4] sm:$0xf]
  %v1867 = vld [vmem:[%s4 + $0xe8] sm:$0xf]
  %v1868 = vld [vmem:[%s4 + $0xec] sm:$0xf]
  %v1869 = vld [vmem:[%s4 + $0xf0] sm:$0xf]
  %v1870 = vld [vmem:[%s4 + $0xf4] sm:$0xf]
  %v1871 = vld [vmem:[%s4 + $0xf8] sm:$0xf]
  %v1872 = vld [vmem:[%s4 + $0xfc] sm:$0xf]
  %v1873 = vld [vmem:[%s4 + $0x100] sm:$0xf]
  %v1874 = vld [vmem:[%s4 + $0x104] sm:$0xf]
  %v1875 = vld [vmem:[%s4 + $0x108] sm:$0xf]
  %v1876 = vld [vmem:[%s4 + $0x10c] sm:$0xf]
  %v1877 = vld [vmem:[%s4 + $0x110] sm:$0xf]
  %v1878 = vld [vmem:[%s4 + $0x114] sm:$0xf]
  %v1879 = vld [vmem:[%s4 + $0x118] sm:$0xf]
  %v1880 = vld [vmem:[%s4 + $0x11c] sm:$0xf]
  %v1881 = vld [vmem:[%s4 + $0x120] sm:$0xf]
  %v1882 = vld [vmem:[%s4 + $0x124] sm:$0xf]
  %v1883 = vld [vmem:[%s4 + $0x128] sm:$0xf]
  %v1884 = vld [vmem:[%s4 + $0x12c] sm:$0xf]
  %v1885 = vld [vmem:[%s4 + $0x130] sm:$0xf]
  %v1886 = vld [vmem:[%s4 + $0x134] sm:$0xf]
  %v1887 = vld [vmem:[%s4 + $0x138] sm:$0xf]
  %v1888 = vld [vmem:[%s4 + $0x13c] sm:$0xf]
  %v1889 = vlaneseq
  %v1890 = vshrl.u32 %v1889, 7
  %v1891 = vsub.s32 3, %v1890
  %v1892 = vrot.slane %v30, %v1891
  %v1893 = vpack.c.b16 %v1799, %v1798
  %v1894 = vpack.c.b16 %v1800, %v1799
  %v1895 = vpack.c.b16 %v1801, %v1800
  %v1896 = vpack.c.b16 %v1802, %v1801
  %v1897 = vpack.c.b16 %v1803, %v1802
  %v1898 = vpack.c.b16 %v1804, %v1803
  %v1899 = vpack.c.b16 %v1805, %v1804
  %v1900 = vpack.c.b16 %v1806, %v1805
  %v1901 = vpack.c.b16 %v1807, %v1806
  %v1902 = vpack.c.b16 %v1804, %v1804
  %v1903 = vpack.c.b16 %v1805, %v1805
  %v1904 = vpack.c.b16 %v1806, %v1806
  %v1905 = vpack.c.b16 %v1807, %v1807
  %v1906 = vpack.c.b16 %v1808, %v1808
  %v2001 = vunpack.c.l.b16 %v1809
  %v2002 = vunpack.c.l.b16 %v1810
  %v2003 = vunpack.c.l.b16 %v1811
  %v2004 = vunpack.c.l.b16 %v1812
  %v2005 = vunpack.c.l.b16 %v1813
  %v2006 = vunpack.c.l.b16 %v1814
  %v2007 = vunpack.c.l.b16 %v1815
  %v2008 = vunpack.c.l.b16 %v1816
  %v2009 = vunpack.c.l.b16 %v1817
  %v2010 = vunpack.c.l.b16 %v1818
  %v2011 = vunpack.c.l.b16 %v1819
  %v2012 = vunpack.c.l.b16 %v1820
  %v2013 = vunpack.c.l.b16 %v1821
  %v2014 = vunpack.c.l.b16 %v1822
  %v2015 = vunpack.c.l.b16 %v1823
  %v2016 = vunpack.c.l.b16 %v1824
  %v2017 = vunpack.c.l.b16 %v1825
  %v2018 = vunpack.c.l.b16 %v1826
  %v2019 = vunpack.c.l.b16 %v1827
  %v2020 = vunpack.c.l.b16 %v1828
  %v2021 = vunpack.c.l.b16 %v1829
  %v2022 = vunpack.c.l.b16 %v1830
  %v2023 = vunpack.c.l.b16 %v1831
  %v2024 = vunpack.c.l.b16 %v1832
  %v2025 = vunpack.c.l.b16 %v1833
  %v2026 = vunpack.c.l.b16 %v1834
  %v2027 = vunpack.c.l.b16 %v1835
  %v2028 = vunpack.c.l.b16 %v1836
  %v2029 = vunpack.c.l.b16 %v1837
  %v2030 = vunpack.c.l.b16 %v1838
  %v2031 = vunpack.c.l.b16 %v1839
  %v2032 = vunpack.c.l.b16 %v1840
  %v2033 = vunpack.c.l.b16 %v1841
  %v2034 = vunpack.c.l.b16 %v1842
  %v2035 = vunpack.c.l.b16 %v1843
  %v2036 = vunpack.c.l.b16 %v1844
  %v2037 = vunpack.c.l.b16 %v1845
  %v2038 = vunpack.c.l.b16 %v1846
  %v2039 = vunpack.c.l.b16 %v1847
  %v2040 = vunpack.c.l.b16 %v1848
  %v2041 = vunpack.c.l.b16 %v1849
  %v2042 = vunpack.c.l.b16 %v1850
  %v2043 = vunpack.c.l.b16 %v1851
  %v2044 = vunpack.c.l.b16 %v1852
  %v2045 = vunpack.c.l.b16 %v1853
  %v2046 = vunpack.c.l.b16 %v1854
  %v2047 = vunpack.c.l.b16 %v1855
  %v2048 = vunpack.c.l.b16 %v1856
  %v2049 = vunpack.c.l.b16 %v1857
  %v2050 = vunpack.c.l.b16 %v1858
  %v2051 = vunpack.c.l.b16 %v1859
  %v2052 = vunpack.c.l.b16 %v1860
  %v2053 = vunpack.c.l.b16 %v1861
  %v2054 = vunpack.c.l.b16 %v1862
  %v2055 = vunpack.c.l.b16 %v1863
  %v2056 = vunpack.c.l.b16 %v1864
  %v2057 = vunpack.c.l.b16 %v1865
  %v2058 = vunpack.c.l.b16 %v1866
  %v2059 = vunpack.c.l.b16 %v1867
  %v2060 = vunpack.c.l.b16 %v1868
  %v2061 = vunpack.c.l.b16 %v1869
  %v2062 = vunpack.c.l.b16 %v1870
  %v2063 = vunpack.c.l.b16 %v1871
  %v2064 = vunpack.c.l.b16 %v1872
  %v2065 = vunpack.c.l.b16 %v1873
  %v2066 = vunpack.c.l.b16 %v1874
  %v2067 = vunpack.c.l.b16 %v1875
  %v2068 = vunpack.c.l.b16 %v1876
  %v2069 = vunpack.c.l.b16 %v1877
  %v2070 = vunpack.c.l.b16 %v1878
  %v2071 = vunpack.c.l.b16 %v1879
  %v2072 = vunpack.c.l.b16 %v1880
  %v2073 = vunpack.c.l.b16 %v1881
  %v2074 = vunpack.c.l.b16 %v1882
  %v2075 = vunpack.c.l.b16 %v1883
  %v2076 = vunpack.c.l.b16 %v1884
  %v2077 = vunpack.c.l.b16 %v1885
  %v2078 = vunpack.c.l.b16 %v1886
  %v2079 = vunpack.c.l.b16 %v1887
  %v2080 = vunpack.c.l.b16 %v1888
  %v2081 = vpack.c.b16 %v2002, %v2001
  %v2082 = vpack.c.b16 %v2004, %v2003
  %v2083 = vpack.c.b16 %v2006, %v2005
  %v2084 = vpack.c.b16 %v2008, %v2007
  %v2085 = vpack.c.b16 %v2010, %v2009
  %v2086 = vpack.c.b16 %v2012, %v2011
  %v2087 = vpack.c.b16 %v2014, %v2013
  %v2088 = vpack.c.b16 %v2016, %v2015
  %v2089 = vpack.c.b16 %v2018, %v2017
  %v2090 = vpack.c.b16 %v2020, %v2019
  %v2091 = vpack.c.b16 %v2022, %v2021
  %v2092 = vpack.c.b16 %v2024, %v2023
  %v2093 = vpack.c.b16 %v2026, %v2025
  %v2094 = vpack.c.b16 %v2028, %v2027
  %v2095 = vpack.c.b16 %v2030, %v2029
  %v2096 = vpack.c.b16 %v2032, %v2031
  %v2097 = vpack.c.b16 %v2034, %v2033
  %v2098 = vpack.c.b16 %v2036, %v2035
  %v2099 = vpack.c.b16 %v2038, %v2037
  %v2100 = vpack.c.b16 %v2040, %v2039
  %v2101 = vpack.c.b16 %v2042, %v2041
  %v2102 = vpack.c.b16 %v2044, %v2043
  %v2103 = vpack.c.b16 %v2046, %v2045
  %v2104 = vpack.c.b16 %v2048, %v2047
  %v2105 = vpack.c.b16 %v2050, %v2049
  %v2106 = vpack.c.b16 %v2052, %v2051
  %v2107 = vpack.c.b16 %v2054, %v2053
  %v2108 = vpack.c.b16 %v2056, %v2055
  %v2109 = vpack.c.b16 %v2058, %v2057
  %v2110 = vpack.c.b16 %v2060, %v2059
  %v2111 = vpack.c.b16 %v2062, %v2061
  %v2112 = vpack.c.b16 %v2064, %v2063
  %v2113 = vpack.c.b16 %v2066, %v2065
  %v2114 = vpack.c.b16 %v2068, %v2067
  %v2115 = vpack.c.b16 %v2070, %v2069
  %v2116 = vpack.c.b16 %v2072, %v2071
  %v2117 = vpack.c.b16 %v2074, %v2073
  %v2118 = vpack.c.b16 %v2076, %v2075
  %v2119 = vpack.c.b16 %v2078, %v2077
  %v2120 = vpack.c.b16 %v2080, %v2079
  %2161 = vmatprep.subr.bf16.mxu0 0
  %2162 = vmatpush1.bf16.msra.mxu0 %v2088
  %2163 = vmatprep.subr.bf16.mxu0 0
  %2164 = vmatpush1.bf16.msra.mxu0 %v2087
  %2165 = vmatprep.subr.bf16.mxu0 0
  %2166 = vmatpush1.bf16.msra.mxu0 %v2086
  %2167 = vmatprep.subr.bf16.mxu0 0
  %2168 = vmatpush1.bf16.msra.mxu0 %v2085
  %2169 = vmatprep.subr.bf16.mxu0 0
  %2170 = vmatpush1.bf16.msra.mxu0 %v2084
  %2171 = vmatprep.subr.bf16.mxu0 0
  %2172 = vmatpush1.bf16.msra.mxu0 %v2083
  %2173 = vmatprep.subr.bf16.mxu0 0
  %2174 = vmatpush1.bf16.msra.mxu0 %v2082
  %2175 = vmatprep.subr.bf16.mxu0 0
  %2176 = vmatpush1.bf16.msra.mxu0 %v2081
  %2177 = vmatprep.subr.bf16.mxu0 0
  %2178 = vmatpush2.bf16.msra.mxu0 %v2096
  %2179 = vmatprep.subr.bf16.mxu0 0
  %2180 = vmatpush2.bf16.msra.mxu0 %v2095
  %2181 = vmatprep.subr.bf16.mxu0 0
  %2182 = vmatpush2.bf16.msra.mxu0 %v2094
  %2183 = vmatprep.subr.bf16.mxu0 0
  %2184 = vmatpush2.bf16.msra.mxu0 %v2093
  %2185 = vmatprep.subr.bf16.mxu0 0
  %2186 = vmatpush2.bf16.msra.mxu0 %v2092
  %2187 = vmatprep.subr.bf16.mxu0 0
  %2188 = vmatpush2.bf16.msra.mxu0 %v2091
  %2189 = vmatprep.subr.bf16.mxu0 0
  %2190 = vmatpush2.bf16.msra.mxu0 %v2090
  %2191 = vmatprep.subr.bf16.mxu0 0
  %2192 = vmatpush2.bf16.msra.mxu0 %v2089
  %2193 = vmatprep.mubr.bf16.mxu0 %v1894
  %2194 = vmatmul.mubr.bf16.gmra.mxu0 %v1893
  %v2195 = vpop.f32.mrf.mxu0
  %v2196 = vadd.f32 %v1892, %v2195
  %v2197 = vpop.f32.mrf.mxu0
  %v2198 = vpop.f32.mrf.mxu0
  %v2199 = vadd.f32 %v1892, %v2198
  %v2200 = vpop.f32.mrf.mxu0
  %2201 = vmatprep.mubr.bf16.mxu0 %v1896
  %2202 = vmatmul.mubr.bf16.gmra.mxu0 %v1895
  %v2203 = vpop.f32.mrf.mxu0
  %v2204 = vadd.f32 %v1892, %v2203
  %v2205 = vpop.f32.mrf.mxu0
  %v2206 = vpop.f32.mrf.mxu0
  %v2207 = vadd.f32 %v1892, %v2206
  %v2208 = vpop.f32.mrf.mxu0
  %2209 = vmatprep.mubr.bf16.mxu0 %v1898
  %2210 = vmatmul.mubr.bf16.gmra.mxu0 %v1897
  %v2211 = vpop.f32.mrf.mxu0
  %v2212 = vadd.f32 %v1892, %v2211
  %v2213 = vpop.f32.mrf.mxu0
  %v2214 = vpop.f32.mrf.mxu0
  %v2215 = vadd.f32 %v1892, %v2214
  %v2216 = vpop.f32.mrf.mxu0
  %2217 = vmatprep.mubr.bf16.mxu0 %v1903
  %2218 = vmatmul.mubr.bf16.gmra.mxu0 %v1902
  %v2219 = vpop.f32.mrf.mxu0
  %v2220 = vadd.f32 %v1892, %v2219
  %v2221 = vpop.f32.mrf.mxu0
  %v2222 = vpop.f32.mrf.mxu0
  %v2223 = vpop.f32.mrf.mxu0
  %2224 = vdwg.mxu0
  %2225 = vmatprep.subr.bf16.mxu0 0
  %2226 = vmatpush1.bf16.msra.mxu0 %v2104
  %2227 = vmatprep.subr.bf16.mxu0 0
  %2228 = vmatpush1.bf16.msra.mxu0 %v2103
  %2229 = vmatprep.subr.bf16.mxu0 0
  %2230 = vmatpush1.bf16.msra.mxu0 %v2102
  %2231 = vmatprep.subr.bf16.mxu0 0
  %2232 = vmatpush1.bf16.msra.mxu0 %v2101
  %2233 = vmatprep.subr.bf16.mxu0 0
  %2234 = vmatpush1.bf16.msra.mxu0 %v2100
  %2235 = vmatprep.subr.bf16.mxu0 0
  %2236 = vmatpush1.bf16.msra.mxu0 %v2099
  %2237 = vmatprep.subr.bf16.mxu0 0
  %2238 = vmatpush1.bf16.msra.mxu0 %v2098
  %2239 = vmatprep.subr.bf16.mxu0 0
  %2240 = vmatpush1.bf16.msra.mxu0 %v2097
  %2241 = vmatprep.subr.bf16.mxu0 0
  %2242 = vmatpush2.bf16.msra.mxu0 %v2112
  %2243 = vmatprep.subr.bf16.mxu0 0
  %2244 = vmatpush2.bf16.msra.mxu0 %v2111
  %2245 = vmatprep.subr.bf16.mxu0 0
  %2246 = vmatpush2.bf16.msra.mxu0 %v2110
  %2247 = vmatprep.subr.bf16.mxu0 0
  %2248 = vmatpush2.bf16.msra.mxu0 %v2109
  %2249 = vmatprep.subr.bf16.mxu0 0
  %2250 = vmatpush2.bf16.msra.mxu0 %v2108
  %2251 = vmatprep.subr.bf16.mxu0 0
  %2252 = vmatpush2.bf16.msra.mxu0 %v2107
  %2253 = vmatprep.subr.bf16.mxu0 0
  %2254 = vmatpush2.bf16.msra.mxu0 %v2106
  %2255 = vmatprep.subr.bf16.mxu0 0
  %2256 = vmatpush2.bf16.msra.mxu0 %v2105
  %2257 = vmatprep.mubr.bf16.mxu0 %v1896
  %2258 = vmatmul.mubr.bf16.gmra.mxu0 %v1895
  %v2259 = vpop.f32.mrf.mxu0
  %v2260 = vadd.f32 %v2196, %v2259
  %v2261 = vpop.f32.mrf.mxu0
  %v2262 = vpop.f32.mrf.mxu0
  %v2263 = vadd.f32 %v2199, %v2262
  %v2264 = vpop.f32.mrf.mxu0
  %2265 = vmatprep.mubr.bf16.mxu0 %v1898
  %2266 = vmatmul.mubr.bf16.gmra.mxu0 %v1897
  %v2267 = vpop.f32.mrf.mxu0
  %v2268 = vadd.f32 %v2204, %v2267
  %v2269 = vpop.f32.mrf.mxu0
  %v2270 = vpop.f32.mrf.mxu0
  %v2271 = vadd.f32 %v2207, %v2270
  %v2272 = vpop.f32.mrf.mxu0
  %2273 = vmatprep.mubr.bf16.mxu0 %v1900
  %2274 = vmatmul.mubr.bf16.gmra.mxu0 %v1899
  %v2275 = vpop.f32.mrf.mxu0
  %v2276 = vadd.f32 %v2212, %v2275
  %v2277 = vpop.f32.mrf.mxu0
  %v2278 = vpop.f32.mrf.mxu0
  %v2279 = vadd.f32 %v2215, %v2278
  %v2280 = vpop.f32.mrf.mxu0
  %2281 = vmatprep.mubr.bf16.mxu0 %v1905
  %2282 = vmatmul.mubr.bf16.gmra.mxu0 %v1904
  %v2283 = vpop.f32.mrf.mxu0
  %v2284 = vadd.f32 %v2220, %v2283
  %v2285 = vpop.f32.mrf.mxu0
  %v2286 = vpop.f32.mrf.mxu0
  %v2287 = vpop.f32.mrf.mxu0
  %2288 = vdwg.mxu0
  %2289 = vmatprep.subr.bf16.mxu0 0
  %2290 = vmatpush1.bf16.msra.mxu0 %v2120
  %2291 = vmatprep.subr.bf16.mxu0 0
  %2292 = vmatpush1.bf16.msra.mxu0 %v2119
  %2293 = vmatprep.subr.bf16.mxu0 0
  %2294 = vmatpush1.bf16.msra.mxu0 %v2118
  %2295 = vmatprep.subr.bf16.mxu0 0
  %2296 = vmatpush1.bf16.msra.mxu0 %v2117
  %2297 = vmatprep.subr.bf16.mxu0 0
  %2298 = vmatpush1.bf16.msra.mxu0 %v2116
  %2299 = vmatprep.subr.bf16.mxu0 0
  %2300 = vmatpush1.bf16.msra.mxu0 %v2115
  %2301 = vmatprep.subr.bf16.mxu0 0
  %2302 = vmatpush1.bf16.msra.mxu0 %v2114
  %2303 = vmatprep.subr.bf16.mxu0 0
  %2304 = vmatpush1.bf16.msra.mxu0 %v2113
  %2305 = vmatprep.subr.bf16.mxu0 0
  %2306 = vmatpush2.bf16.msra.mxu0 0
  %2307 = vmatprep.subr.bf16.mxu0 0
  %2308 = vmatpush2.bf16.msra.mxu0 0
  %2309 = vmatprep.subr.bf16.mxu0 0
  %2310 = vmatpush2.bf16.msra.mxu0 0
  %2311 = vmatprep.subr.bf16.mxu0 0
  %2312 = vmatpush2.bf16.msra.mxu0 0
  %2313 = vmatprep.subr.bf16.mxu0 0
  %2314 = vmatpush2.bf16.msra.mxu0 0
  %2315 = vmatprep.subr.bf16.mxu0 0
  %2316 = vmatpush2.bf16.msra.mxu0 0
  %2317 = vmatprep.subr.bf16.mxu0 0
  %2318 = vmatpush2.bf16.msra.mxu0 0
  %2319 = vmatprep.subr.bf16.mxu0 0
  %2320 = vmatpush2.bf16.msra.mxu0 0
  %2321 = vmatprep.mubr.bf16.mxu0 0
  %2322 = vmatmul.mubr.bf16.gmra.mxu0 %v1897
  %v2323 = vpop.f32.mrf.mxu0
  %v2324 = vadd.f32 %v2260, %v2323
  %v2325 = vpop.f32.mrf.mxu0
  %v2326 = vpop.f32.mrf.mxu0
  %v2327 = vadd.f32 %v2263, %v2326
  %v2328 = vpop.f32.mrf.mxu0
  %2329 = vmatprep.mubr.bf16.mxu0 0
  %2330 = vmatmul.mubr.bf16.gmra.mxu0 %v1899
  %v2331 = vpop.f32.mrf.mxu0
  %v2332 = vadd.f32 %v2268, %v2331
  %v2333 = vpop.f32.mrf.mxu0
  %v2334 = vpop.f32.mrf.mxu0
  %v2335 = vadd.f32 %v2271, %v2334
  %v2336 = vpop.f32.mrf.mxu0
  %2337 = vmatprep.mubr.bf16.mxu0 0
  %2338 = vmatmul.mubr.bf16.gmra.mxu0 %v1901
  %v2339 = vpop.f32.mrf.mxu0
  %v2340 = vadd.f32 %v2276, %v2339
  %v2341 = vpop.f32.mrf.mxu0
  %v2342 = vpop.f32.mrf.mxu0
  %v2343 = vadd.f32 %v2279, %v2342
  %v2344 = vpop.f32.mrf.mxu0
  %2345 = vmatprep.mubr.bf16.mxu0 0
  %2346 = vmatmul.mubr.bf16.gmra.mxu0 %v1906
  %v2347 = vpop.f32.mrf.mxu0
  %v2348 = vadd.f32 %v2284, %v2347
  %v2349 = vpop.f32.mrf.mxu0
  %v2350 = vpop.f32.mrf.mxu0
  %v2351 = vpop.f32.mrf.mxu0
  %2352 = vdwg.mxu0
  %v2353 = vmax.f32 %v2324, 0.0
  %v2354 = vmax.f32 %v2327, 0.0
  %v2355 = vmax.f32 %v2332, 0.0
  %v2356 = vmax.f32 %v2335, 0.0
  %v2357 = vmax.f32 %v2340, 0.0
  %v2358 = vmax.f32 %v2343, 0.0
  %v2359 = vmax.f32 %v2348, 0.0
  %v2360 = vpack.c.bf16 %v2354, %v2353
  %v2361 = vpack.c.bf16 %v2356, %v2355
  %v2362 = vpack.c.bf16 %v2358, %v2357
  %v2363 = vpack.c.bf16 %v2359, %v2359
  %v2368 = vunpack.c.l.b16 %v2360
  %v2369 = vunpack.c.h.b16 %v2360
  %v2370 = vunpack.c.l.b16 %v2361
  %v2371 = vunpack.c.h.b16 %v2361
  %v2372 = vunpack.c.l.b16 %v2362
  %v2373 = vunpack.c.h.b16 %v2362
  %v2374 = vunpack.c.l.b16 %v2363
  %v2375 = vld [vmem:[%s5] sm:$0xf]
  %v2376 = vld [vmem:[%s5 + $0x4] sm:$0xf]
  %v2377 = vld [vmem:[%s5 + $0x8] sm:$0xf]
  %v2378 = vld [vmem:[%s5 + $0xc] sm:$0xf]
  %v2379 = vld [vmem:[%s5 + $0x10] sm:$0xf]
  %v2380 = vld [vmem:[%s5 + $0x14] sm:$0xf]
  %v2381 = vld [vmem:[%s5 + $0x18] sm:$0xf]
  %v2382 = vld [vmem:[%s5 + $0x1c] sm:$0xf]
  %v2383 = vld [vmem:[%s5 + $0x20] sm:$0xf]
  %v2384 = vld [vmem:[%s5 + $0x24] sm:$0xf]
  %v2385 = vld [vmem:[%s5 + $0x28] sm:$0xf]
  %v2386 = vld [vmem:[%s5 + $0x2c] sm:$0xf]
  %v2387 = vld [vmem:[%s5 + $0x30] sm:$0xf]
  %v2388 = vld [vmem:[%s5 + $0x34] sm:$0xf]
  %v2389 = vld [vmem:[%s5 + $0x38] sm:$0xf]
  %v2390 = vld [vmem:[%s5 + $0x3c] sm:$0xf]
  %v2391 = vld [vmem:[%s5 + $0x40] sm:$0xf]
  %v2392 = vld [vmem:[%s5 + $0x44] sm:$0xf]
  %v2393 = vld [vmem:[%s5 + $0x48] sm:$0xf]
  %v2394 = vld [vmem:[%s5 + $0x4c] sm:$0xf]
  %v2395 = vld [vmem:[%s5 + $0x50] sm:$0xf]
  %v2396 = vld [vmem:[%s5 + $0x54] sm:$0xf]
  %v2397 = vld [vmem:[%s5 + $0x58] sm:$0xf]
  %v2398 = vld [vmem:[%s5 + $0x5c] sm:$0xf]
  %v2399 = vld [vmem:[%s5 + $0x60] sm:$0xf]
  %v2400 = vld [vmem:[%s5 + $0x64] sm:$0xf]
  %v2401 = vld [vmem:[%s5 + $0x68] sm:$0xf]
  %v2402 = vld [vmem:[%s5 + $0x6c] sm:$0xf]
  %v2403 = vld [vmem:[%s5 + $0x70] sm:$0xf]
  %v2404 = vld [vmem:[%s5 + $0x74] sm:$0xf]
  %v2405 = vld [vmem:[%s5 + $0x78] sm:$0xf]
  %v2406 = vld [vmem:[%s5 + $0x7c] sm:$0xf]
  %v2407 = vld [vmem:[%s5 + $0x80] sm:$0xf]
  %v2408 = vld [vmem:[%s5 + $0x84] sm:$0xf]
  %v2409 = vld [vmem:[%s5 + $0x88] sm:$0xf]
  %v2410 = vld [vmem:[%s5 + $0x8c] sm:$0xf]
  %v2411 = vld [vmem:[%s5 + $0x90] sm:$0xf]
  %v2412 = vld [vmem:[%s5 + $0x94] sm:$0xf]
  %v2413 = vld [vmem:[%s5 + $0x98] sm:$0xf]
  %v2414 = vld [vmem:[%s5 + $0x9c] sm:$0xf]
  %v2415 = vld [vmem:[%s5 + $0xa0] sm:$0xf]
  %v2416 = vld [vmem:[%s5 + $0xa4] sm:$0xf]
  %v2417 = vld [vmem:[%s5 + $0xa8] sm:$0xf]
  %v2418 = vld [vmem:[%s5 + $0xac] sm:$0xf]
  %v2419 = vld [vmem:[%s5 + $0xb0] sm:$0xf]
  %v2420 = vld [vmem:[%s5 + $0xb4] sm:$0xf]
  %v2421 = vld [vmem:[%s5 + $0xb8] sm:$0xf]
  %v2422 = vld [vmem:[%s5 + $0xbc] sm:$0xf]
  %v2423 = vld [vmem:[%s5 + $0xc0] sm:$0xf]
  %v2424 = vld [vmem:[%s5 + $0xc4] sm:$0xf]
  %v2425 = vld [vmem:[%s5 + $0xc8] sm:$0xf]
  %v2426 = vld [vmem:[%s5 + $0xcc] sm:$0xf]
  %v2427 = vld [vmem:[%s5 + $0xd0] sm:$0xf]
  %v2428 = vld [vmem:[%s5 + $0xd4] sm:$0xf]
  %v2429 = vld [vmem:[%s5 + $0xd8] sm:$0xf]
  %v2430 = vld [vmem:[%s5 + $0xdc] sm:$0xf]
  %v2431 = vld [vmem:[%s5 + $0xe0] sm:$0xf]
  %v2432 = vld [vmem:[%s5 + $0xe4] sm:$0xf]
  %v2433 = vld [vmem:[%s5 + $0xe8] sm:$0xf]
  %v2434 = vld [vmem:[%s5 + $0xec] sm:$0xf]
  %v2435 = vld [vmem:[%s5 + $0xf0] sm:$0xf]
  %v2436 = vld [vmem:[%s5 + $0xf4] sm:$0xf]
  %v2437 = vld [vmem:[%s5 + $0xf8] sm:$0xf]
  %v2438 = vld [vmem:[%s5 + $0xfc] sm:$0xf]
  %v2439 = vld [vmem:[%s5 + $0x100] sm:$0xf]
  %v2440 = vld [vmem:[%s5 + $0x104] sm:$0xf]
  %v2441 = vld [vmem:[%s5 + $0x108] sm:$0xf]
  %v2442 = vld [vmem:[%s5 + $0x10c] sm:$0xf]
  %v2443 = vld [vmem:[%s5 + $0x110] sm:$0xf]
  %v2444 = vld [vmem:[%s5 + $0x114] sm:$0xf]
  %v2445 = vld [vmem:[%s5 + $0x118] sm:$0xf]
  %v2446 = vld [vmem:[%s5 + $0x11c] sm:$0xf]
  %v2447 = vld [vmem:[%s5 + $0x120] sm:$0xf]
  %v2448 = vld [vmem:[%s5 + $0x124] sm:$0xf]
  %v2449 = vld [vmem:[%s5 + $0x128] sm:$0xf]
  %v2450 = vld [vmem:[%s5 + $0x12c] sm:$0xf]
  %v2451 = vld [vmem:[%s5 + $0x130] sm:$0xf]
  %v2452 = vld [vmem:[%s5 + $0x134] sm:$0xf]
  %v2453 = vld [vmem:[%s5 + $0x138] sm:$0xf]
  %v2454 = vld [vmem:[%s5 + $0x13c] sm:$0xf]
  %v2455 = vlaneseq
  %v2456 = vshrl.u32 %v2455, 7
  %v2457 = vsub.s32 4, %v2456
  %v2458 = vrot.slane %v30, %v2457
  %v2459 = vpack.c.b16 %v2369, %v2368
  %v2460 = vpack.c.b16 %v2370, %v2369
  %v2461 = vpack.c.b16 %v2371, %v2370
  %v2462 = vpack.c.b16 %v2372, %v2371
  %v2463 = vpack.c.b16 %v2373, %v2372
  %v2464 = vpack.c.b16 %v2370, %v2370
  %v2465 = vpack.c.b16 %v2371, %v2371
  %v2466 = vpack.c.b16 %v2372, %v2372
  %v2467 = vpack.c.b16 %v2373, %v2373
  %v2468 = vpack.c.b16 %v2374, %v2374
  %v2559 = vunpack.c.l.b16 %v2375
  %v2560 = vunpack.c.l.b16 %v2376
  %v2561 = vunpack.c.l.b16 %v2377
  %v2562 = vunpack.c.l.b16 %v2378
  %v2563 = vunpack.c.l.b16 %v2379
  %v2564 = vunpack.c.l.b16 %v2380
  %v2565 = vunpack.c.l.b16 %v2381
  %v2566 = vunpack.c.l.b16 %v2382
  %v2567 = vunpack.c.l.b16 %v2383
  %v2568 = vunpack.c.l.b16 %v2384
  %v2569 = vunpack.c.l.b16 %v2385
  %v2570 = vunpack.c.l.b16 %v2386
  %v2571 = vunpack.c.l.b16 %v2387
  %v2572 = vunpack.c.l.b16 %v2388
  %v2573 = vunpack.c.l.b16 %v2389
  %v2574 = vunpack.c.l.b16 %v2390
  %v2575 = vunpack.c.l.b16 %v2391
  %v2576 = vunpack.c.l.b16 %v2392
  %v2577 = vunpack.c.l.b16 %v2393
  %v2578 = vunpack.c.l.b16 %v2394
  %v2579 = vunpack.c.l.b16 %v2395
  %v2580 = vunpack.c.l.b16 %v2396
  %v2581 = vunpack.c.l.b16 %v2397
  %v2582 = vunpack.c.l.b16 %v2398
  %v2583 = vunpack.c.l.b16 %v2399
  %v2584 = vunpack.c.l.b16 %v2400
  %v2585 = vunpack.c.l.b16 %v2401
  %v2586 = vunpack.c.l.b16 %v2402
  %v2587 = vunpack.c.l.b16 %v2403
  %v2588 = vunpack.c.l.b16 %v2404
  %v2589 = vunpack.c.l.b16 %v2405
  %v2590 = vunpack.c.l.b16 %v2406
  %v2591 = vunpack.c.l.b16 %v2407
  %v2592 = vunpack.c.l.b16 %v2408
  %v2593 = vunpack.c.l.b16 %v2409
  %v2594 = vunpack.c.l.b16 %v2410
  %v2595 = vunpack.c.l.b16 %v2411
  %v2596 = vunpack.c.l.b16 %v2412
  %v2597 = vunpack.c.l.b16 %v2413
  %v2598 = vunpack.c.l.b16 %v2414
  %v2599 = vunpack.c.l.b16 %v2415
  %v2600 = vunpack.c.l.b16 %v2416
  %v2601 = vunpack.c.l.b16 %v2417
  %v2602 = vunpack.c.l.b16 %v2418
  %v2603 = vunpack.c.l.b16 %v2419
  %v2604 = vunpack.c.l.b16 %v2420
  %v2605 = vunpack.c.l.b16 %v2421
  %v2606 = vunpack.c.l.b16 %v2422
  %v2607 = vunpack.c.l.b16 %v2423
  %v2608 = vunpack.c.l.b16 %v2424
  %v2609 = vunpack.c.l.b16 %v2425
  %v2610 = vunpack.c.l.b16 %v2426
  %v2611 = vunpack.c.l.b16 %v2427
  %v2612 = vunpack.c.l.b16 %v2428
  %v2613 = vunpack.c.l.b16 %v2429
  %v2614 = vunpack.c.l.b16 %v2430
  %v2615 = vunpack.c.l.b16 %v2431
  %v2616 = vunpack.c.l.b16 %v2432
  %v2617 = vunpack.c.l.b16 %v2433
  %v2618 = vunpack.c.l.b16 %v2434
  %v2619 = vunpack.c.l.b16 %v2435
  %v2620 = vunpack.c.l.b16 %v2436
  %v2621 = vunpack.c.l.b16 %v2437
  %v2622 = vunpack.c.l.b16 %v2438
  %v2623 = vunpack.c.l.b16 %v2439
  %v2624 = vunpack.c.l.b16 %v2440
  %v2625 = vunpack.c.l.b16 %v2441
  %v2626 = vunpack.c.l.b16 %v2442
  %v2627 = vunpack.c.l.b16 %v2443
  %v2628 = vunpack.c.l.b16 %v2444
  %v2629 = vunpack.c.l.b16 %v2445
  %v2630 = vunpack.c.l.b16 %v2446
  %v2631 = vunpack.c.l.b16 %v2447
  %v2632 = vunpack.c.l.b16 %v2448
  %v2633 = vunpack.c.l.b16 %v2449
  %v2634 = vunpack.c.l.b16 %v2450
  %v2635 = vunpack.c.l.b16 %v2451
  %v2636 = vunpack.c.l.b16 %v2452
  %v2637 = vunpack.c.l.b16 %v2453
  %v2638 = vunpack.c.l.b16 %v2454
  %v2639 = vpack.c.b16 %v2560, %v2559
  %v2640 = vpack.c.b16 %v2562, %v2561
  %v2641 = vpack.c.b16 %v2564, %v2563
  %v2642 = vpack.c.b16 %v2566, %v2565
  %v2643 = vpack.c.b16 %v2568, %v2567
  %v2644 = vpack.c.b16 %v2570, %v2569
  %v2645 = vpack.c.b16 %v2572, %v2571
  %v2646 = vpack.c.b16 %v2574, %v2573
  %v2647 = vpack.c.b16 %v2576, %v2575
  %v2648 = vpack.c.b16 %v2578, %v2577
  %v2649 = vpack.c.b16 %v2580, %v2579
  %v2650 = vpack.c.b16 %v2582, %v2581
  %v2651 = vpack.c.b16 %v2584, %v2583
  %v2652 = vpack.c.b16 %v2586, %v2585
  %v2653 = vpack.c.b16 %v2588, %v2587
  %v2654 = vpack.c.b16 %v2590, %v2589
  %v2655 = vpack.c.b16 %v2592, %v2591
  %v2656 = vpack.c.b16 %v2594, %v2593
  %v2657 = vpack.c.b16 %v2596, %v2595
  %v2658 = vpack.c.b16 %v2598, %v2597
  %v2659 = vpack.c.b16 %v2600, %v2599
  %v2660 = vpack.c.b16 %v2602, %v2601
  %v2661 = vpack.c.b16 %v2604, %v2603
  %v2662 = vpack.c.b16 %v2606, %v2605
  %v2663 = vpack.c.b16 %v2608, %v2607
  %v2664 = vpack.c.b16 %v2610, %v2609
  %v2665 = vpack.c.b16 %v2612, %v2611
  %v2666 = vpack.c.b16 %v2614, %v2613
  %v2667 = vpack.c.b16 %v2616, %v2615
  %v2668 = vpack.c.b16 %v2618, %v2617
  %v2669 = vpack.c.b16 %v2620, %v2619
  %v2670 = vpack.c.b16 %v2622, %v2621
  %v2671 = vpack.c.b16 %v2624, %v2623
  %v2672 = vpack.c.b16 %v2626, %v2625
  %v2673 = vpack.c.b16 %v2628, %v2627
  %v2674 = vpack.c.b16 %v2630, %v2629
  %v2675 = vpack.c.b16 %v2632, %v2631
  %v2676 = vpack.c.b16 %v2634, %v2633
  %v2677 = vpack.c.b16 %v2636, %v2635
  %v2678 = vpack.c.b16 %v2638, %v2637
  %2719 = vmatprep.subr.bf16.mxu0 0
  %2720 = vmatpush1.bf16.msra.mxu0 %v2646
  %2721 = vmatprep.subr.bf16.mxu0 0
  %2722 = vmatpush1.bf16.msra.mxu0 %v2645
  %2723 = vmatprep.subr.bf16.mxu0 0
  %2724 = vmatpush1.bf16.msra.mxu0 %v2644
  %2725 = vmatprep.subr.bf16.mxu0 0
  %2726 = vmatpush1.bf16.msra.mxu0 %v2643
  %2727 = vmatprep.subr.bf16.mxu0 0
  %2728 = vmatpush1.bf16.msra.mxu0 %v2642
  %2729 = vmatprep.subr.bf16.mxu0 0
  %2730 = vmatpush1.bf16.msra.mxu0 %v2641
  %2731 = vmatprep.subr.bf16.mxu0 0
  %2732 = vmatpush1.bf16.msra.mxu0 %v2640
  %2733 = vmatprep.subr.bf16.mxu0 0
  %2734 = vmatpush1.bf16.msra.mxu0 %v2639
  %2735 = vmatprep.subr.bf16.mxu0 0
  %2736 = vmatpush2.bf16.msra.mxu0 %v2654
  %2737 = vmatprep.subr.bf16.mxu0 0
  %2738 = vmatpush2.bf16.msra.mxu0 %v2653
  %2739 = vmatprep.subr.bf16.mxu0 0
  %2740 = vmatpush2.bf16.msra.mxu0 %v2652
  %2741 = vmatprep.subr.bf16.mxu0 0
  %2742 = vmatpush2.bf16.msra.mxu0 %v2651
  %2743 = vmatprep.subr.bf16.mxu0 0
  %2744 = vmatpush2.bf16.msra.mxu0 %v2650
  %2745 = vmatprep.subr.bf16.mxu0 0
  %2746 = vmatpush2.bf16.msra.mxu0 %v2649
  %2747 = vmatprep.subr.bf16.mxu0 0
  %2748 = vmatpush2.bf16.msra.mxu0 %v2648
  %2749 = vmatprep.subr.bf16.mxu0 0
  %2750 = vmatpush2.bf16.msra.mxu0 %v2647
  %2751 = vmatprep.mubr.bf16.mxu0 %v2460
  %2752 = vmatmul.mubr.bf16.gmra.mxu0 %v2459
  %v2753 = vpop.f32.mrf.mxu0
  %v2754 = vadd.f32 %v2458, %v2753
  %v2755 = vpop.f32.mrf.mxu0
  %v2756 = vpop.f32.mrf.mxu0
  %v2757 = vadd.f32 %v2458, %v2756
  %v2758 = vpop.f32.mrf.mxu0
  %2759 = vmatprep.mubr.bf16.mxu0 %v2465
  %2760 = vmatmul.mubr.bf16.gmra.mxu0 %v2464
  %v2761 = vpop.f32.mrf.mxu0
  %v2762 = vadd.f32 %v2458, %v2761
  %v2763 = vpop.f32.mrf.mxu0
  %v2764 = vpop.f32.mrf.mxu0
  %v2765 = vpop.f32.mrf.mxu0
  %2766 = vdwg.mxu0
  %2767 = vmatprep.subr.bf16.mxu0 0
  %2768 = vmatpush1.bf16.msra.mxu0 %v2662
  %2769 = vmatprep.subr.bf16.mxu0 0
  %2770 = vmatpush1.bf16.msra.mxu0 %v2661
  %2771 = vmatprep.subr.bf16.mxu0 0
  %2772 = vmatpush1.bf16.msra.mxu0 %v2660
  %2773 = vmatprep.subr.bf16.mxu0 0
  %2774 = vmatpush1.bf16.msra.mxu0 %v2659
  %2775 = vmatprep.subr.bf16.mxu0 0
  %2776 = vmatpush1.bf16.msra.mxu0 %v2658
  %2777 = vmatprep.subr.bf16.mxu0 0
  %2778 = vmatpush1.bf16.msra.mxu0 %v2657
  %2779 = vmatprep.subr.bf16.mxu0 0
  %2780 = vmatpush1.bf16.msra.mxu0 %v2656
  %2781 = vmatprep.subr.bf16.mxu0 0
  %2782 = vmatpush1.bf16.msra.mxu0 %v2655
  %2783 = vmatprep.subr.bf16.mxu0 0
  %2784 = vmatpush2.bf16.msra.mxu0 %v2670
  %2785 = vmatprep.subr.bf16.mxu0 0
  %2786 = vmatpush2.bf16.msra.mxu0 %v2669
  %2787 = vmatprep.subr.bf16.mxu0 0
  %2788 = vmatpush2.bf16.msra.mxu0 %v2668
  %2789 = vmatprep.subr.bf16.mxu0 0
  %2790 = vmatpush2.bf16.msra.mxu0 %v2667
  %2791 = vmatprep.subr.bf16.mxu0 0
  %2792 = vmatpush2.bf16.msra.mxu0 %v2666
  %2793 = vmatprep.subr.bf16.mxu0 0
  %2794 = vmatpush2.bf16.msra.mxu0 %v2665
  %2795 = vmatprep.subr.bf16.mxu0 0
  %2796 = vmatpush2.bf16.msra.mxu0 %v2664
  %2797 = vmatprep.subr.bf16.mxu0 0
  %2798 = vmatpush2.bf16.msra.mxu0 %v2663
  %2799 = vmatprep.mubr.bf16.mxu0 %v2462
  %2800 = vmatmul.mubr.bf16.gmra.mxu0 %v2461
  %v2801 = vpop.f32.mrf.mxu0
  %v2802 = vadd.f32 %v2754, %v2801
  %v2803 = vpop.f32.mrf.mxu0
  %v2804 = vpop.f32.mrf.mxu0
  %v2805 = vadd.f32 %v2757, %v2804
  %v2806 = vpop.f32.mrf.mxu0
  %2807 = vmatprep.mubr.bf16.mxu0 %v2467
  %2808 = vmatmul.mubr.bf16.gmra.mxu0 %v2466
  %v2809 = vpop.f32.mrf.mxu0
  %v2810 = vadd.f32 %v2762, %v2809
  %v2811 = vpop.f32.mrf.mxu0
  %v2812 = vpop.f32.mrf.mxu0
  %v2813 = vpop.f32.mrf.mxu0
  %2814 = vdwg.mxu0
  %2815 = vmatprep.subr.bf16.mxu0 0
  %2816 = vmatpush1.bf16.msra.mxu0 %v2678
  %2817 = vmatprep.subr.bf16.mxu0 0
  %2818 = vmatpush1.bf16.msra.mxu0 %v2677
  %2819 = vmatprep.subr.bf16.mxu0 0
  %2820 = vmatpush1.bf16.msra.mxu0 %v2676
  %2821 = vmatprep.subr.bf16.mxu0 0
  %2822 = vmatpush1.bf16.msra.mxu0 %v2675
  %2823 = vmatprep.subr.bf16.mxu0 0
  %2824 = vmatpush1.bf16.msra.mxu0 %v2674
  %2825 = vmatprep.subr.bf16.mxu0 0
  %2826 = vmatpush1.bf16.msra.mxu0 %v2673
  %2827 = vmatprep.subr.bf16.mxu0 0
  %2828 = vmatpush1.bf16.msra.mxu0 %v2672
  %2829 = vmatprep.subr.bf16.mxu0 0
  %2830 = vmatpush1.bf16.msra.mxu0 %v2671
  %2831 = vmatprep.subr.bf16.mxu0 0
  %2832 = vmatpush2.bf16.msra.mxu0 0
  %2833 = vmatprep.subr.bf16.mxu0 0
  %2834 = vmatpush2.bf16.msra.mxu0 0
  %2835 = vmatprep.subr.bf16.mxu0 0
  %2836 = vmatpush2.bf16.msra.mxu0 0
  %2837 = vmatprep.subr.bf16.mxu0 0
  %2838 = vmatpush2.bf16.msra.mxu0 0
  %2839 = vmatprep.subr.bf16.mxu0 0
  %2840 = vmatpush2.bf16.msra.mxu0 0
  %2841 = vmatprep.subr.bf16.mxu0 0
  %2842 = vmatpush2.bf16.msra.mxu0 0
  %2843 = vmatprep.subr.bf16.mxu0 0
  %2844 = vmatpush2.bf16.msra.mxu0 0
  %2845 = vmatprep.subr.bf16.mxu0 0
  %2846 = vmatpush2.bf16.msra.mxu0 0
  %2847 = vmatprep.mubr.bf16.mxu0 0
  %2848 = vmatmul.mubr.bf16.gmra.mxu0 %v2463
  %v2849 = vpop.f32.mrf.mxu0
  %v2850 = vadd.f32 %v2802, %v2849
  %v2851 = vpop.f32.mrf.mxu0
  %v2852 = vpop.f32.mrf.mxu0
  %v2853 = vadd.f32 %v2805, %v2852
  %v2854 = vpop.f32.mrf.mxu0
  %2855 = vmatprep.mubr.bf16.mxu0 0
  %2856 = vmatmul.mubr.bf16.gmra.mxu0 %v2468
  %v2857 = vpop.f32.mrf.mxu0
  %v2858 = vadd.f32 %v2810, %v2857
  %v2859 = vpop.f32.mrf.mxu0
  %v2860 = vpop.f32.mrf.mxu0
  %v2861 = vpop.f32.mrf.mxu0
  %2862 = vdwg.mxu0
  %v2863 = vmax.f32 %v2850, 0.0
  %v2864 = vmax.f32 %v2853, 0.0
  %v2865 = vmax.f32 %v2858, 0.0
  %v2866 = vpack.c.bf16 %v2864, %v2863
  %v2867 = vpack.c.bf16 %v2865, %v2865
  %v2870 = vunpack.c.l.b16 %v2866
  %v2871 = vunpack.c.h.b16 %v2866
  %v2872 = vunpack.c.l.b16 %v2867
  %v2873 = vpack.c.b16 %v2870, %v2870
  %v2874 = vpack.c.b16 %v2871, %v2871
  %v2875 = vpack.c.b16 %v2872, %v2872
  %v2879 = vld [vmem:[%s6] sm:$0xf]
  %v2880 = vld [vmem:[%s6 + $0x4] sm:$0xf]
  %v2881 = vld [vmem:[%s6 + $0x8] sm:$0xf]
  %v2882 = vld [vmem:[%s6 + $0xc] sm:$0xf]
  %v2883 = vld [vmem:[%s6 + $0x10] sm:$0xf]
  %v2884 = vld [vmem:[%s6 + $0x14] sm:$0xf]
  %v2885 = vld [vmem:[%s6 + $0x18] sm:$0xf]
  %v2886 = vld [vmem:[%s6 + $0x1c] sm:$0xf]
  %v2887 = vld [vmem:[%s6 + $0x20] sm:$0xf]
  %v2888 = vld [vmem:[%s6 + $0x24] sm:$0xf]
  %v2889 = vld [vmem:[%s6 + $0x28] sm:$0xf]
  %v2890 = vld [vmem:[%s6 + $0x2c] sm:$0xf]
  %v2891 = vld [vmem:[%s6 + $0x30] sm:$0xf]
  %v2892 = vld [vmem:[%s6 + $0x34] sm:$0xf]
  %v2893 = vld [vmem:[%s6 + $0x38] sm:$0xf]
  %v2894 = vld [vmem:[%s6 + $0x3c] sm:$0xf]
  %v2895 = vld [vmem:[%s6 + $0x40] sm:$0xf]
  %v2896 = vld [vmem:[%s6 + $0x44] sm:$0xf]
  %v2897 = vld [vmem:[%s6 + $0x48] sm:$0xf]
  %v2898 = vld [vmem:[%s6 + $0x4c] sm:$0xf]
  %v2899 = vld [vmem:[%s6 + $0x50] sm:$0xf]
  %v2900 = vld [vmem:[%s6 + $0x54] sm:$0xf]
  %v2901 = vld [vmem:[%s6 + $0x58] sm:$0xf]
  %v2902 = vld [vmem:[%s6 + $0x5c] sm:$0xf]
  %v2903 = vld [vmem:[%s6 + $0x60] sm:$0xf]
  %v2904 = vld [vmem:[%s6 + $0x64] sm:$0xf]
  %v2905 = vld [vmem:[%s6 + $0x68] sm:$0xf]
  %v2906 = vld [vmem:[%s6 + $0x6c] sm:$0xf]
  %v2907 = vld [vmem:[%s6 + $0x70] sm:$0xf]
  %v2908 = vld [vmem:[%s6 + $0x74] sm:$0xf]
  %v2909 = vld [vmem:[%s6 + $0x78] sm:$0xf]
  %v2910 = vld [vmem:[%s6 + $0x7c] sm:$0xf]
  %v2911 = vld [vmem:[%s6 + $0x80] sm:$0xf]
  %v2912 = vld [vmem:[%s6 + $0x84] sm:$0xf]
  %v2913 = vld [vmem:[%s6 + $0x88] sm:$0xf]
  %v2914 = vld [vmem:[%s6 + $0x8c] sm:$0xf]
  %v2915 = vld [vmem:[%s6 + $0x90] sm:$0xf]
  %v2916 = vld [vmem:[%s6 + $0x94] sm:$0xf]
  %v2917 = vld [vmem:[%s6 + $0x98] sm:$0xf]
  %v2918 = vld [vmem:[%s6 + $0x9c] sm:$0xf]
  %v2919 = vld [vmem:[%s6 + $0xa0] sm:$0xf]
  %v2920 = vld [vmem:[%s6 + $0xa4] sm:$0xf]
  %v2921 = vld [vmem:[%s6 + $0xa8] sm:$0xf]
  %v2922 = vld [vmem:[%s6 + $0xac] sm:$0xf]
  %v2923 = vld [vmem:[%s6 + $0xb0] sm:$0xf]
  %v2924 = vld [vmem:[%s6 + $0xb4] sm:$0xf]
  %v2925 = vld [vmem:[%s6 + $0xb8] sm:$0xf]
  %v2926 = vld [vmem:[%s6 + $0xbc] sm:$0xf]
  %v2927 = vlaneseq
  %v2928 = vshrl.u32 %v2927, 7
  %v2929 = vsub.s32 5, %v2928
  %v2930 = vrot.slane %v30, %v2929
  %v2979 = vunpack.c.l.b16 %v2879
  %v2980 = vunpack.c.l.b16 %v2880
  %v2981 = vunpack.c.l.b16 %v2881
  %v2982 = vunpack.c.l.b16 %v2882
  %v2983 = vunpack.c.l.b16 %v2883
  %v2984 = vunpack.c.l.b16 %v2884
  %v2985 = vunpack.c.l.b16 %v2885
  %v2986 = vunpack.c.l.b16 %v2886
  %v2987 = vunpack.c.l.b16 %v2887
  %v2988 = vunpack.c.l.b16 %v2888
  %v2989 = vunpack.c.l.b16 %v2889
  %v2990 = vunpack.c.l.b16 %v2890
  %v2991 = vunpack.c.l.b16 %v2891
  %v2992 = vunpack.c.l.b16 %v2892
  %v2993 = vunpack.c.l.b16 %v2893
  %v2994 = vunpack.c.l.b16 %v2894
  %v2995 = vunpack.c.l.b16 %v2895
  %v2996 = vunpack.c.l.b16 %v2896
  %v2997 = vunpack.c.l.b16 %v2897
  %v2998 = vunpack.c.l.b16 %v2898
  %v2999 = vunpack.c.l.b16 %v2899
  %v3000 = vunpack.c.l.b16 %v2900
  %v3001 = vunpack.c.l.b16 %v2901
  %v3002 = vunpack.c.l.b16 %v2902
  %v3003 = vunpack.c.l.b16 %v2903
  %v3004 = vunpack.c.l.b16 %v2904
  %v3005 = vunpack.c.l.b16 %v2905
  %v3006 = vunpack.c.l.b16 %v2906
  %v3007 = vunpack.c.l.b16 %v2907
  %v3008 = vunpack.c.l.b16 %v2908
  %v3009 = vunpack.c.l.b16 %v2909
  %v3010 = vunpack.c.l.b16 %v2910
  %v3011 = vunpack.c.l.b16 %v2911
  %v3012 = vunpack.c.l.b16 %v2912
  %v3013 = vunpack.c.l.b16 %v2913
  %v3014 = vunpack.c.l.b16 %v2914
  %v3015 = vunpack.c.l.b16 %v2915
  %v3016 = vunpack.c.l.b16 %v2916
  %v3017 = vunpack.c.l.b16 %v2917
  %v3018 = vunpack.c.l.b16 %v2918
  %v3019 = vunpack.c.l.b16 %v2919
  %v3020 = vunpack.c.l.b16 %v2920
  %v3021 = vunpack.c.l.b16 %v2921
  %v3022 = vunpack.c.l.b16 %v2922
  %v3023 = vunpack.c.l.b16 %v2923
  %v3024 = vunpack.c.l.b16 %v2924
  %v3025 = vunpack.c.l.b16 %v2925
  %v3026 = vunpack.c.l.b16 %v2926
  %v3027 = vpack.c.b16 %v2980, %v2979
  %v3028 = vpack.c.b16 %v2982, %v2981
  %v3029 = vpack.c.b16 %v2984, %v2983
  %v3030 = vpack.c.b16 %v2986, %v2985
  %v3031 = vpack.c.b16 %v2988, %v2987
  %v3032 = vpack.c.b16 %v2990, %v2989
  %v3033 = vpack.c.b16 %v2992, %v2991
  %v3034 = vpack.c.b16 %v2994, %v2993
  %v3035 = vpack.c.b16 %v2996, %v2995
  %v3036 = vpack.c.b16 %v2998, %v2997
  %v3037 = vpack.c.b16 %v3000, %v2999
  %v3038 = vpack.c.b16 %v3002, %v3001
  %v3039 = vpack.c.b16 %v3004, %v3003
  %v3040 = vpack.c.b16 %v3006, %v3005
  %v3041 = vpack.c.b16 %v3008, %v3007
  %v3042 = vpack.c.b16 %v3010, %v3009
  %v3043 = vpack.c.b16 %v3012, %v3011
  %v3044 = vpack.c.b16 %v3014, %v3013
  %v3045 = vpack.c.b16 %v3016, %v3015
  %v3046 = vpack.c.b16 %v3018, %v3017
  %v3047 = vpack.c.b16 %v3020, %v3019
  %v3048 = vpack.c.b16 %v3022, %v3021
  %v3049 = vpack.c.b16 %v3024, %v3023
  %v3050 = vpack.c.b16 %v3026, %v3025
  %3075 = vmatprep.subr.bf16.mxu0 0
  %3076 = vmatpush1.bf16.msra.mxu0 %v3034
  %3077 = vmatprep.subr.bf16.mxu0 0
  %3078 = vmatpush1.bf16.msra.mxu0 %v3033
  %3079 = vmatprep.subr.bf16.mxu0 0
  %3080 = vmatpush1.bf16.msra.mxu0 %v3032
  %3081 = vmatprep.subr.bf16.mxu0 0
  %3082 = vmatpush1.bf16.msra.mxu0 %v3031
  %3083 = vmatprep.subr.bf16.mxu0 0
  %3084 = vmatpush1.bf16.msra.mxu0 %v3030
  %3085 = vmatprep.subr.bf16.mxu0 0
  %3086 = vmatpush1.bf16.msra.mxu0 %v3029
  %3087 = vmatprep.subr.bf16.mxu0 0
  %3088 = vmatpush1.bf16.msra.mxu0 %v3028
  %3089 = vmatprep.subr.bf16.mxu0 0
  %3090 = vmatpush1.bf16.msra.mxu0 %v3027
  %3091 = vmatprep.subr.bf16.mxu0 0
  %3092 = vmatpush2.bf16.msra.mxu0 %v3042
  %3093 = vmatprep.subr.bf16.mxu0 0
  %3094 = vmatpush2.bf16.msra.mxu0 %v3041
  %3095 = vmatprep.subr.bf16.mxu0 0
  %3096 = vmatpush2.bf16.msra.mxu0 %v3040
  %3097 = vmatprep.subr.bf16.mxu0 0
  %3098 = vmatpush2.bf16.msra.mxu0 %v3039
  %3099 = vmatprep.subr.bf16.mxu0 0
  %3100 = vmatpush2.bf16.msra.mxu0 %v3038
  %3101 = vmatprep.subr.bf16.mxu0 0
  %3102 = vmatpush2.bf16.msra.mxu0 %v3037
  %3103 = vmatprep.subr.bf16.mxu0 0
  %3104 = vmatpush2.bf16.msra.mxu0 %v3036
  %3105 = vmatprep.subr.bf16.mxu0 0
  %3106 = vmatpush2.bf16.msra.mxu0 %v3035
  %3107 = vmatprep.mubr.bf16.mxu0 %v2874
  %3108 = vmatmul.mubr.bf16.gmra.mxu0 %v2873
  %v3109 = vpop.f32.mrf.mxu0
  %v3110 = vadd.f32 %v2930, %v3109
  %v3111 = vpop.f32.mrf.mxu0
  %v3112 = vpop.f32.mrf.mxu0
  %v3113 = vpop.f32.mrf.mxu0
  %3114 = vdwg.mxu0
  %3115 = vmatprep.subr.bf16.mxu0 0
  %3116 = vmatpush1.bf16.msra.mxu0 %v3050
  %3117 = vmatprep.subr.bf16.mxu0 0
  %3118 = vmatpush1.bf16.msra.mxu0 %v3049
  %3119 = vmatprep.subr.bf16.mxu0 0
  %3120 = vmatpush1.bf16.msra.mxu0 %v3048
  %3121 = vmatprep.subr.bf16.mxu0 0
  %3122 = vmatpush1.bf16.msra.mxu0 %v3047
  %3123 = vmatprep.subr.bf16.mxu0 0
  %3124 = vmatpush1.bf16.msra.mxu0 %v3046
  %3125 = vmatprep.subr.bf16.mxu0 0
  %3126 = vmatpush1.bf16.msra.mxu0 %v3045
  %3127 = vmatprep.subr.bf16.mxu0 0
  %3128 = vmatpush1.bf16.msra.mxu0 %v3044
  %3129 = vmatprep.subr.bf16.mxu0 0
  %3130 = vmatpush1.bf16.msra.mxu0 %v3043
  %3131 = vmatprep.subr.bf16.mxu0 0
  %3132 = vmatpush2.bf16.msra.mxu0 0
  %3133 = vmatprep.subr.bf16.mxu0 0
  %3134 = vmatpush2.bf16.msra.mxu0 0
  %3135 = vmatprep.subr.bf16.mxu0 0
  %3136 = vmatpush2.bf16.msra.mxu0 0
  %3137 = vmatprep.subr.bf16.mxu0 0
  %3138 = vmatpush2.bf16.msra.mxu0 0
  %3139 = vmatprep.subr.bf16.mxu0 0
  %3140 = vmatpush2.bf16.msra.mxu0 0
  %3141 = vmatprep.subr.bf16.mxu0 0
  %3142 = vmatpush2.bf16.msra.mxu0 0
  %3143 = vmatprep.subr.bf16.mxu0 0
  %3144 = vmatpush2.bf16.msra.mxu0 0
  %3145 = vmatprep.subr.bf16.mxu0 0
  %3146 = vmatpush2.bf16.msra.mxu0 0
  %3147 = vmatprep.mubr.bf16.mxu0 0
  %3148 = vmatmul.mubr.bf16.gmra.mxu0 %v2875
  %v3149 = vpop.f32.mrf.mxu0
  %v3150 = vadd.f32 %v3110, %v3149
  %v3151 = vpop.f32.mrf.mxu0
  %v3152 = vpop.f32.mrf.mxu0
  %v3153 = vpop.f32.mrf.mxu0
  %3154 = vdwg.mxu0
  %3155 = vst [vmem:[%s8] sm:$0xff] %v3150
  // Predicated region
  $region34: #{forward.1} parent=0 // pred_check
    _
  $region35: #{forward.1} parent=0 // pred_check_branch
    %3157 = sbr.rel (0) target = $region37
  $region36: #{forward.1} parent=0 // pred_region
    _
  $region37: #{forward.1} parent=0 // pred_fallthru
    _
  // Predicated region
  $region38: #{forward.1} parent=0 // pred_check
    _
  $region39: #{forward.1} parent=0 // pred_check_branch
    %3159 = sbr.rel (0) target = $region41
  $region40: #{forward.1} parent=0 // pred_region
    _
  $region41: #{forward.1} parent=0 // pred_fallthru
    _

</llo_original>
